<compile_context>
chip_gen: v5e
topology: v5e:2x2
jax: 0.10.0
libtpu: 0.0.40
codegen_flags: <defaults>
</compile_context>

<pallas_src>
import functools

import jax
import jax.numpy as jnp
import numpy as np
from jax.experimental import pallas as pl
from jax.experimental.pallas import tpu as pltpu

BN_EPS = 1e-5
LEAKY_SLOPE = 0.1
LANE = 128
NEG_MASK = -1e30  # bias for padded class columns -> exp() underflows to 0


def _round_up(n, m):
    return ((n + m - 1) // m) * m


def _pick_batch_tile(batch):
    """Largest 128-multiple tile (<=2048) that keeps >= 2 grid steps (v7x: 2 TCs)."""
    for t in (2048, 1024, 512, 256):
        if batch >= 2 * t:
            return t
    return 128


# ----------------------------------------------------------------------------
# Kernel builder
# ----------------------------------------------------------------------------
def _build_kernel(cfg):
    """Ref order: x, vec_pack, W_0..W_{L-1}, W_out, out."""
    residual_flags = cfg["residual_flags"]
    apply_input_affine = cfg["apply_input_affine"]
    aff_off = cfg["input_affine_off"]
    bias_slices = cfg["bias_slices"]
    in_kern = cfg["in_kern"]
    num_classes = cfg["num_classes"]

    def kernel(x_ref, vec_ref, *rest):
        w_refs, o_ref = rest[:-1], rest[-1]

        if apply_input_affine:
            # bn0 could not be folded into layer 0 (block 0 residual needs BN(x)).
            o0, o1 = aff_off
            hf = x_ref[...].astype(jnp.float32)
            hf = hf * vec_ref[:, o0:o0 + in_kern] + vec_ref[:, o1:o1 + in_kern]
            h = hf.astype(jnp.bfloat16)
        else:
            h = x_ref[...]                               # already bf16

        n_blocks = len(w_refs) - 1
        for i in range(n_blocks):
            off, n = bias_slices[i]
            # Linear (BN + bias already folded into W/b): bf16 MXU, f32 acc.
            y = jnp.dot(h, w_refs[i][...], preferred_element_type=jnp.float32)
            y = y + vec_ref[:, off:off + n]
            y = jnp.where(y > 0.0, y, LEAKY_SLOPE * y)   # LeakyReLU(0.1), f32
            yb = y.astype(jnp.bfloat16)                  # one cast per layer
            h = (h + yb) if residual_flags[i] else yb    # Dropout == id (eval)

        off, n = bias_slices[-1]
        logits = jnp.dot(h, w_refs[-1][...], preferred_element_type=jnp.float32)
        logits = logits + vec_ref[:, off:off + n]        # padded cols -> -1e30

        m = jnp.max(logits, axis=1, keepdims=True)
        e = jnp.exp(logits - m)
        denom = jnp.sum(e, axis=1, keepdims=True)
        probs = e * pl.reciprocal(denom, approx=True)
        o_ref[...] = probs[:, :num_classes]              # fused column slice

    return kernel


# ----------------------------------------------------------------------------
# Raw parameters (PyTorch-style: xavier_normal_ Linear weights, zero biases;
# BN running stats randomized to simulate a trained model in eval mode)
# ----------------------------------------------------------------------------
def init_raw_params(key, input_size, num_classes, hidden_sizes):
    def bn_stats(k, n):
        k1, k2, k3, k4 = jax.random.split(k, 4)
        gamma = 1.0 + 0.1 * jax.random.normal(k1, (n,), jnp.float32)
        beta = 0.1 * jax.random.normal(k2, (n,), jnp.float32)
        mean = 0.2 * jax.random.normal(k3, (n,), jnp.float32)
        var = jax.random.uniform(k4, (n,), jnp.float32, minval=0.5, maxval=1.5)
        return gamma, beta, mean, var

    params = {}
    key, k = jax.random.split(key)
    params["bn0"] = bn_stats(k, input_size)

    blocks = []
    cur = input_size
    for h in hidden_sizes:
        key, kw, kb = jax.random.split(key, 3)
        std = float(np.sqrt(2.0 / (cur + h)))  # xavier_normal_
        W = jax.random.normal(kw, (cur, h), jnp.float32) * std
        b = jnp.zeros((h,), jnp.float32)
        blocks.append((W, b) + bn_stats(kb, h))
        cur = h
    params["blocks"] = blocks

    key, kw = jax.random.split(key)
    std = float(np.sqrt(2.0 / (cur + num_classes)))
    params["out"] = (jax.random.normal(kw, (cur, num_classes), jnp.float32) * std,
                     jnp.zeros((num_classes,), jnp.float32))
    return params


# ----------------------------------------------------------------------------
# Offline fold (eval BN + bias -> weights), pad hidden/class dims to 128 lanes,
# pack vectors.  The input feature dim is left un-padded when bn0 folds.
# ----------------------------------------------------------------------------
def fold_and_pad(raw, input_size, num_classes, hidden_sizes):
    residual_flags = []
    cur = input_size
    for h in hidden_sizes:
        residual_flags.append(cur == h)
        cur = h
    residual_flags = tuple(residual_flags)

    hid_pads = [_round_up(h, LANE) for h in hidden_sizes]
    out_pad = _round_up(num_classes, LANE)

    def bn_fold(gamma, beta, mean, var):
        s = gamma / jnp.sqrt(var + BN_EPS)
        return s, beta - mean * s

    s0, t0 = bn_fold(*raw["bn0"])
    fold_bn0 = not residual_flags[0]   # fold only valid if block 0 has no residual
    # Un-padded input features when bn0 folds (x is consumed only by the first dot);
    # otherwise pad to 128 so the block-0 residual shapes match.
    in_kern = input_size if fold_bn0 else _round_up(input_size, LANE)

    weights, biases = [], []
    prev_true, prev_pad = input_size, in_kern
    for i, (hs, hp) in enumerate(zip(hidden_sizes, hid_pads)):
        W, b, gamma, beta, mean, var = raw["blocks"][i]
        W = W.astype(jnp.float32)
        b = b.astype(jnp.float32)
        if i == 0 and fold_bn0:
            b = t0 @ W + b                  # (x*s0 + t0) @ W + b
            W = s0[:, None] * W
        s, t = bn_fold(gamma, beta, mean, var)
        b = b * s + t                       # BN(Wx + b) = x @ (W*s) + (b*s + t)
        W = W * s[None, :]
        Wp = jnp.zeros((prev_pad, hp), jnp.float32).at[:prev_true, :hs].set(W)
        bp = jnp.zeros((1, hp), jnp.float32).at[0, :hs].set(b)
        weights.append(Wp.astype(jnp.bfloat16))
        biases.append(bp)
        prev_true, prev_pad = hs, hp

    Wo, bo = raw["out"]
    Wop = jnp.zeros((prev_pad, out_pad), jnp.float32).at[:prev_true, :num_classes].set(Wo)
    bop = jnp.full((1, out_pad), NEG_MASK, jnp.float32).at[0, :num_classes].set(bo)
    weights.append(Wop.astype(jnp.bfloat16))
    biases.append(bop)

    # Pack all (1, N) vectors into a single (1, total) f32 array (one DMA stream).
    vec_parts, pos = [], 0
    apply_input_affine = not fold_bn0
    input_affine_off = None
    if apply_input_affine:
        s0p = jnp.zeros((1, in_kern), jnp.float32).at[0, :input_size].set(s0)
        t0p = jnp.zeros((1, in_kern), jnp.float32).at[0, :input_size].set(t0)
        vec_parts += [s0p, t0p]
        input_affine_off = (pos, pos + in_kern)
        pos += 2 * in_kern
    bias_slices = []
    for bp in biases:
        n = bp.shape[1]
        vec_parts.append(bp)
        bias_slices.append((pos, n))
        pos += n
    vec = jnp.concatenate(vec_parts, axis=1)

    cfg = dict(
        residual_flags=residual_flags,
        apply_input_affine=apply_input_affine,
        input_affine_off=input_affine_off,
        bias_slices=tuple(bias_slices),
        in_kern=in_kern,
        out_pad=out_pad,
        input_size=input_size,
        num_classes=num_classes,
    )
    return vec, tuple(weights), cfg


# ----------------------------------------------------------------------------
# Wrapper: pallas_call with one "parallel" grid axis over batch tiles
# ----------------------------------------------------------------------------
def make_forward_fn(cfg):
    kernel = _build_kernel(cfg)
    in_kern = cfg["in_kern"]
    input_size = cfg["input_size"]
    num_classes = cfg["num_classes"]

    def forward(x, vec, weights):
        B = x.shape[0]
        batch_tile = _pick_batch_tile(B)                 # scales with B, >=2 steps
        Bp = -(-B // batch_tile) * batch_tile            # pad batch, no assert

        xb = x.astype(jnp.bfloat16)                      # x fed as bf16
        if Bp != B or in_kern != input_size:
            xb = jnp.zeros((Bp, in_kern), jnp.bfloat16).at[:B, :input_size].set(xb)

        x_spec = pl.BlockSpec((batch_tile, in_kern), lambda i: (i, 0))
        vec_spec = pl.BlockSpec(vec.shape, lambda i: (0, 0))
        w_specs = [pl.BlockSpec(w.shape, lambda i: (0, 0)) for w in weights]
        # Narrow (num_classes-wide) output block: column slice fused into the store.
        out_spec = pl.BlockSpec((batch_tile, num_classes), lambda i: (i, 0))

        out = pl.pallas_call(
            kernel,
            out_shape=jax.ShapeDtypeStruct((Bp, num_classes), jnp.float32),
            grid_spec=pltpu.PrefetchScalarGridSpec(
                num_scalar_prefetch=0,
                grid=(Bp // batch_tile,),
                in_specs=[x_spec, vec_spec] + w_specs,
                out_specs=out_spec,
            ),
            compiler_params=pltpu.CompilerParams(
                dimension_semantics=("parallel",)),
        )(xb, vec, *weights)
        return out[:B]

    return jax.jit(forward)


# ----------------------------------------------------------------------------
# References
# ----------------------------------------------------------------------------
def reference_forward_f32(x, raw, input_size, hidden_sizes):
    """Literal PyTorch eval-mode semantics in f32."""
    def bn(v, gamma, beta, mean, var):
        return (v - mean) / jnp.sqrt(var + BN_EPS) * gamma + beta

    h = bn(x, *raw["bn0"])
    cur = input_size
    for (W, b, gamma, beta, mean, var), hs in zip(raw["blocks"], hidden_sizes):
        y = h @ W + b
        y = bn(y, gamma, beta, mean, var)
        y = jnp.where(y > 0.0, y, LEAKY_SLOPE * y)
        h = h + y if cur == hs else y
        cur = hs
    Wo, bo = raw["out"]
    return jax.nn.softmax(h @ Wo + bo, axis=1)


def reference_forward_folded(x, vec, weights, cfg):
    """Pure-JAX mirror of the kernel numerics (folded weights, bf16 activations)."""
    in_kern = cfg["in_kern"]
    if cfg["apply_input_affine"]:
        xp = jnp.zeros((x.shape[0], in_kern), jnp.float32).at[:, :cfg["input_size"]].set(x)
        o0, o1 = cfg["input_affine_off"]
        hf = xp.astype(jnp.bfloat16).astype(jnp.float32)
        hf = hf * vec[:, o0:o0 + in_kern] + vec[:, o1:o1 + in_kern]
        h = hf.astype(jnp.bfloat16)
    else:
        h = x.astype(jnp.bfloat16)
    for i in range(len(weights) - 1):
        off, n = cfg["bias_slices"][i]
        y = jnp.dot(h, weights[i], preferred_element_type=jnp.float32) + vec[:, off:off + n]
        y = jnp.where(y > 0.0, y, LEAKY_SLOPE * y).astype(jnp.bfloat16)
        h = h + y if cfg["residual_flags"][i] else y
    off, n = cfg["bias_slices"][-1]
    logits = jnp.dot(h, weights[-1], preferred_element_type=jnp.float32) + vec[:, off:off + n]
    return jax.nn.softmax(logits, axis=1)[:, :cfg["num_classes"]]


# ----------------------------------------------------------------------------
if __name__ == "__main__":
    INPUT_SIZE = 32
    NUM_CLASSES = 4
    HIDDEN_SIZES = (128, 64, 32)
    BATCH = 512        # -> batch_tile 256, 2 grid steps (both v7x TCs busy)

    key = jax.random.PRNGKey(0)
    key, xkey, pkey = jax.random.split(key, 3)

    x = jax.random.normal(xkey, (BATCH, INPUT_SIZE), jnp.float32)
    raw = init_raw_params(pkey, INPUT_SIZE, NUM_CLASSES, HIDDEN_SIZES)
    vec, weights, cfg = fold_and_pad(raw, INPUT_SIZE, NUM_CLASSES, HIDDEN_SIZES)

    forward = make_forward_fn(cfg)
    out = jax.block_until_ready(forward(x, vec, weights))
    out_np = np.asarray(out)

    # 1) tight check vs. a pure-JAX mirror of the kernel numerics
    ref_mirror = np.asarray(reference_forward_folded(x, vec, weights, cfg))
    np.testing.assert_allclose(out_np, ref_mirror, rtol=5e-3, atol=5e-3)

    # 2) semantic check vs. the f32 PyTorch-style reference (bf16 loosens it)
    ref_f32 = np.asarray(reference_forward_f32(x, raw, INPUT_SIZE, HIDDEN_SIZES))
    np.testing.assert_allclose(out_np, ref_f32, rtol=2e-2, atol=2e-2)

    # rows of a softmax must sum to 1 (approx reciprocal -> slightly loose)
    np.testing.assert_allclose(out_np.sum(axis=1), np.ones(BATCH),
                               rtol=5e-3, atol=5e-3)

    print("KERNEL_OK")
</pallas_src>

<mosaic_0001>
module attributes {stable_mosaic.version = 11 : i64} {
  func.func @kernel(%arg0: i32, %arg1: memref<256x32xbf16, #tpu.memory_space<vmem>>, %arg2: memref<1x512xf32, #tpu.memory_space<vmem>>, %arg3: memref<32x128xbf16, #tpu.memory_space<vmem>>, %arg4: memref<128x128xbf16, #tpu.memory_space<vmem>>, %arg5: memref<128x128xbf16, #tpu.memory_space<vmem>>, %arg6: memref<128x128xbf16, #tpu.memory_space<vmem>>, %arg7: memref<256x4xf32, #tpu.memory_space<vmem>>) attributes {dimension_semantics = [#tpu.dimension_semantics<parallel>], iteration_bounds = array<i64: 2>, scalar_prefetch = 0 : i64, scratch_operands = 0 : i64, tpu.core_type = #tpu.core_type<tc>, window_params = [{transform_indices = @transform_0, window_bounds = array<i64: 256, 32>}, {pipeline_mode = #tpu.pipeline_mode<synchronous>, transform_indices = @transform_1, window_bounds = array<i64: 1, 512>}, {pipeline_mode = #tpu.pipeline_mode<synchronous>, transform_indices = @transform_2, window_bounds = array<i64: 32, 128>}, {pipeline_mode = #tpu.pipeline_mode<synchronous>, transform_indices = @transform_3, window_bounds = array<i64: 128, 128>}, {pipeline_mode = #tpu.pipeline_mode<synchronous>, transform_indices = @transform_4, window_bounds = array<i64: 128, 128>}, {pipeline_mode = #tpu.pipeline_mode<synchronous>, transform_indices = @transform_5, window_bounds = array<i64: 128, 128>}, {transform_indices = @transform_6, window_bounds = array<i64: 256, 4>}]} {
    %c0 = arith.constant 0 : index
    %c0_0 = arith.constant 0 : index
    %0 = vector.load %arg1[%c0, %c0_0] : memref<256x32xbf16, #tpu.memory_space<vmem>>, vector<256x32xbf16>
    %c0_1 = arith.constant 0 : index
    %c0_2 = arith.constant 0 : index
    %1 = vector.load %arg3[%c0_1, %c0_2] : memref<32x128xbf16, #tpu.memory_space<vmem>>, vector<32x128xbf16>
    %cst = arith.constant dense<0.000000e+00> : vector<256x128xf32>
    %2 = tpu.matmul %0, %1, %cst {dimension_numbers = #tpu.dot_dimension_numbers<[1], [0], [0], [1], [0, 0, 1, 1], [], []>} : vector<256x32xbf16>, vector<32x128xbf16>, vector<256x128xf32> -> vector<256x128xf32>
    %c0_3 = arith.constant 0 : index
    %c0_4 = arith.constant 0 : index
    %3 = vector.load %arg2[%c0_3, %c0_4] : memref<1x512xf32, #tpu.memory_space<vmem>>, vector<1x128xf32>
    %4 = vector.broadcast %3 : vector<1x128xf32> to vector<256x128xf32>
    %5 = arith.addf %2, %4 : vector<256x128xf32>
    %cst_5 = arith.constant 0.000000e+00 : f32
    %6 = vector.broadcast %cst_5 : f32 to vector<256x128xf32>
    %7 = arith.cmpf ogt, %5, %6 : vector<256x128xf32>
    %cst_6 = arith.constant 1.000000e-01 : f32
    %8 = vector.broadcast %cst_6 : f32 to vector<256x128xf32>
    %9 = arith.mulf %8, %5 : vector<256x128xf32>
    %10 = arith.select %7, %5, %9 : vector<256x128xi1>, vector<256x128xf32>
    %11 = arith.truncf %10 : vector<256x128xf32> to vector<256x128xbf16>
    %c0_7 = arith.constant 0 : index
    %c0_8 = arith.constant 0 : index
    %12 = vector.load %arg4[%c0_7, %c0_8] : memref<128x128xbf16, #tpu.memory_space<vmem>>, vector<128x128xbf16>
    %cst_9 = arith.constant dense<0.000000e+00> : vector<256x128xf32>
    %13 = tpu.matmul %11, %12, %cst_9 {dimension_numbers = #tpu.dot_dimension_numbers<[1], [0], [0], [1], [0, 0, 1, 1], [], []>} : vector<256x128xbf16>, vector<128x128xbf16>, vector<256x128xf32> -> vector<256x128xf32>
    %c0_10 = arith.constant 0 : index
    %c128 = arith.constant 128 : index
    %14 = vector.load %arg2[%c0_10, %c128] : memref<1x512xf32, #tpu.memory_space<vmem>>, vector<1x128xf32>
    %15 = vector.broadcast %14 : vector<1x128xf32> to vector<256x128xf32>
    %16 = arith.addf %13, %15 : vector<256x128xf32>
    %cst_11 = arith.constant 0.000000e+00 : f32
    %17 = vector.broadcast %cst_11 : f32 to vector<256x128xf32>
    %18 = arith.cmpf ogt, %16, %17 : vector<256x128xf32>
    %cst_12 = arith.constant 1.000000e-01 : f32
    %19 = vector.broadcast %cst_12 : f32 to vector<256x128xf32>
    %20 = arith.mulf %19, %16 : vector<256x128xf32>
    %21 = arith.select %18, %16, %20 : vector<256x128xi1>, vector<256x128xf32>
    %22 = arith.truncf %21 : vector<256x128xf32> to vector<256x128xbf16>
    %c0_13 = arith.constant 0 : index
    %c0_14 = arith.constant 0 : index
    %23 = vector.load %arg5[%c0_13, %c0_14] : memref<128x128xbf16, #tpu.memory_space<vmem>>, vector<128x128xbf16>
    %cst_15 = arith.constant dense<0.000000e+00> : vector<256x128xf32>
    %24 = tpu.matmul %22, %23, %cst_15 {dimension_numbers = #tpu.dot_dimension_numbers<[1], [0], [0], [1], [0, 0, 1, 1], [], []>} : vector<256x128xbf16>, vector<128x128xbf16>, vector<256x128xf32> -> vector<256x128xf32>
    %c0_16 = arith.constant 0 : index
    %c256 = arith.constant 256 : index
    %25 = vector.load %arg2[%c0_16, %c256] : memref<1x512xf32, #tpu.memory_space<vmem>>, vector<1x128xf32>
    %26 = vector.broadcast %25 : vector<1x128xf32> to vector<256x128xf32>
    %27 = arith.addf %24, %26 : vector<256x128xf32>
    %cst_17 = arith.constant 0.000000e+00 : f32
    %28 = vector.broadcast %cst_17 : f32 to vector<256x128xf32>
    %29 = arith.cmpf ogt, %27, %28 : vector<256x128xf32>
    %cst_18 = arith.constant 1.000000e-01 : f32
    %30 = vector.broadcast %cst_18 : f32 to vector<256x128xf32>
    %31 = arith.mulf %30, %27 : vector<256x128xf32>
    %32 = arith.select %29, %27, %31 : vector<256x128xi1>, vector<256x128xf32>
    %33 = arith.truncf %32 : vector<256x128xf32> to vector<256x128xbf16>
    %c0_19 = arith.constant 0 : index
    %c0_20 = arith.constant 0 : index
    %34 = vector.load %arg6[%c0_19, %c0_20] : memref<128x128xbf16, #tpu.memory_space<vmem>>, vector<128x128xbf16>
    %cst_21 = arith.constant dense<0.000000e+00> : vector<256x128xf32>
    %35 = tpu.matmul %33, %34, %cst_21 {dimension_numbers = #tpu.dot_dimension_numbers<[1], [0], [0], [1], [0, 0, 1, 1], [], []>} : vector<256x128xbf16>, vector<128x128xbf16>, vector<256x128xf32> -> vector<256x128xf32>
    %c0_22 = arith.constant 0 : index
    %c384 = arith.constant 384 : index
    %36 = vector.load %arg2[%c0_22, %c384] : memref<1x512xf32, #tpu.memory_space<vmem>>, vector<1x128xf32>
    %37 = vector.broadcast %36 : vector<1x128xf32> to vector<256x128xf32>
    %38 = arith.addf %35, %37 : vector<256x128xf32>
    %cst_23 = arith.constant dense<0xFF800000> : vector<256xf32>
    %39 = vector.multi_reduction <maximumf>, %38, %cst_23 [1] : vector<256x128xf32> to vector<256xf32>
    %40 = vector.shape_cast %39 : vector<256xf32> to vector<256x1xf32>
    %41 = vector.broadcast %40 : vector<256x1xf32> to vector<256x128xf32>
    %42 = arith.subf %38, %41 : vector<256x128xf32>
    %43 = math.exp %42 : vector<256x128xf32>
    %cst_24 = arith.constant dense<0.000000e+00> : vector<256xf32>
    %44 = vector.multi_reduction <add>, %43, %cst_24 [1] : vector<256x128xf32> to vector<256xf32>
    %45 = vector.shape_cast %44 : vector<256xf32> to vector<256x1xf32>
    %46 = tpu.reciprocal %45 {approx = true} : vector<256x1xf32> -> vector<256x1xf32>
    %47 = vector.broadcast %46 : vector<256x1xf32> to vector<256x128xf32>
    %48 = arith.mulf %43, %47 : vector<256x128xf32>
    %49 = vector.extract_strided_slice %48 {offsets = [0, 0], sizes = [256, 4], strides = [1, 1]} : vector<256x128xf32> to vector<256x4xf32>
    %c0_25 = arith.constant 0 : index
    %c0_26 = arith.constant 0 : index
    %50 = vector.load %arg7[%c0_25, %c0_26] : memref<256x4xf32, #tpu.memory_space<vmem>>, vector<256x4xf32>
    tpu.vector_store %arg7[%c0_25, %c0_26], %49 {strides = array<i32>} : memref<256x4xf32, #tpu.memory_space<vmem>>, vector<256x4xf32>,
    return
  }
  func.func @transform_0(%arg0: i32) -> (i32, i32) {
    %c0_i32 = arith.constant 0 : i32
    %c0_i32_0 = arith.constant 0 : i32
    return %arg0, %c0_i32 : i32, i32
  }
  func.func @transform_1(%arg0: i32) -> (i32, i32) {
    %c0_i32 = arith.constant 0 : i32
    %c0_i32_0 = arith.constant 0 : i32
    %c0_i32_1 = arith.constant 0 : i32
    return %c0_i32, %c0_i32_0 : i32, i32
  }
  func.func @transform_2(%arg0: i32) -> (i32, i32) {
    %c0_i32 = arith.constant 0 : i32
    %c0_i32_0 = arith.constant 0 : i32
    %c0_i32_1 = arith.constant 0 : i32
    return %c0_i32, %c0_i32_0 : i32, i32
  }
  func.func @transform_3(%arg0: i32) -> (i32, i32) {
    %c0_i32 = arith.constant 0 : i32
    %c0_i32_0 = arith.constant 0 : i32
    %c0_i32_1 = arith.constant 0 : i32
    return %c0_i32, %c0_i32_0 : i32, i32
  }
  func.func @transform_4(%arg0: i32) -> (i32, i32) {
    %c0_i32 = arith.constant 0 : i32
    %c0_i32_0 = arith.constant 0 : i32
    %c0_i32_1 = arith.constant 0 : i32
    return %c0_i32, %c0_i32_0 : i32, i32
  }
  func.func @transform_5(%arg0: i32) -> (i32, i32) {
    %c0_i32 = arith.constant 0 : i32
    %c0_i32_0 = arith.constant 0 : i32
    %c0_i32_1 = arith.constant 0 : i32
    return %c0_i32, %c0_i32_0 : i32, i32
  }
  func.func @transform_6(%arg0: i32) -> (i32, i32) {
    %c0_i32 = arith.constant 0 : i32
    %c0_i32_0 = arith.constant 0 : i32
    return %arg0, %c0_i32 : i32, i32
  }
}

</mosaic_0001>

<llo_original>
// kernel: forward.1
$region0: #{forward.1}
  #allocation0 [shape = 'u32[]', space=smem, size = 0x4, offset = 0x4, fixed_abs, tag = 'smem constant byte address 0x4 - core index']
  #allocation1 [shape = 'u32[72,128]{1,0:T(1,128)}', space=vmem, size = 0x9000, scoped, tag = 'internal scratch']
  %s0 = inlined_call_operand.vmem [shape: bf16[512,32], index: 0, kind: input, shape index: {}]
  %s1 = inlined_call_operand.vmem [shape: f32[1,512], index: 1, kind: input, shape index: {}]
  %s2 = inlined_call_operand.vmem [shape: bf16[32,128], index: 2, kind: input, shape index: {}]
  %s3 = inlined_call_operand.vmem [shape: bf16[128,128], index: 3, kind: input, shape index: {}]
  %s4 = inlined_call_operand.vmem [shape: bf16[128,128], index: 4, kind: input, shape index: {}]
  %s5 = inlined_call_operand.vmem [shape: bf16[128,128], index: 5, kind: input, shape index: {}]
  %s6 = inlined_call_operand.vmem [shape: f32[512,4], index: 6, kind: output, shape index: {}]
  %s7 = sld [smem:[#allocation0]]
  $region57: #{forward.1} parent=0
    _
  %s9 = ssub.s32 1, %s7
  %s10 = scalar_select 0, %s9, %s7
  loop: start=0, step=1, limit=4
  $region2: #{forward.1} parent=0 // loop_pre_header
    _
  $region3: #{forward.1} parent=0 // loop_header
    %s12 = sphi 0, %s16
    %p13 = scmp.ge.s32.totalorder %s12, 4
    %s22 = sphi 0, %s24
    %s25 = sphi 0, %s22
    %s26 = sphi 0, %s25
    %s42 = sphi 0, %s26
    %s46 = sphi 0, %s46
    %s48 = sphi 0, %s46
    %s49 = sphi 0, %s48
    %s63 = sphi 0, %s49
    %s67 = sphi 0, %s67
    %s69 = sphi 0, %s67
    %s70 = sphi 0, %s69
    %s84 = sphi 0, %s70
    %s88 = sphi 0, %s88
    %s90 = sphi 0, %s88
    %s91 = sphi 0, %s90
    %s105 = sphi 0, %s91
    %s109 = sphi 0, %s109
    %s111 = sphi 0, %s109
    %s112 = sphi 0, %s111
    %s126 = sphi 0, %s112
    %s130 = sphi 0, %s130
    %s132 = sphi 0, %s130
    %s133 = sphi 0, %s132
    %s147 = sphi 0, %s133
    %s153 = sphi 0, %s155
    %s156 = sphi 0, %s153
    %s157 = sphi 0, %s156
    %s173 = sphi 0, %s157
  $region4: #{forward.1} parent=0 // loop_header_branch
    %15 = sbr.rel (%p13) target = $region8
  $region5: #{forward.1} parent=0 // loop_body
    %s17 = ssub.s32 %s12, 1
    %s18 = ssub.s32 %s12, 2
    %s19 = sadd.s32 %s12, 1
    %s20 = ssub.s32 %s12, %s19
    %p21 = scmp.eq.s32.totalorder %s20, 0
    %s23 = sadd.s32 %s22, 1
    %s24 = scalar_select %p21, %s22, %s23
    %p27 = pneg %p21
    %p28 = scmp.eq.s32.totalorder %s12, 1
    %p29 = por %p27, %p28
    %p30 = scmp.ne.s32.totalorder %s22, %s25
    %p31 = scmp.eq.s32.totalorder %s12, 0
    %p32 = por %p30, %p31
    %p33 = scmp.ne.s32.totalorder %s22, %s25
    %p34 = scmp.eq.s32.totalorder %s17, 1
    %p35 = por %p33, %p34
    %p36 = scmp.ne.s32.totalorder %s25, %s26
    %p37 = scmp.eq.s32.totalorder %s17, 0
    %p38 = por %p36, %p37
    %p39 = scmp.ne.s32.totalorder %s25, %s26
    %p40 = scmp.eq.s32.totalorder %s18, 1
    %p41 = por %p39, %p40
    %p43 = scmp.ne.s32.totalorder %s26, %s42
    %p44 = scmp.eq.s32.totalorder %s18, 0
    %p45 = por %p43, %p44
    %s47 = sadd.s32 %s46, 1
    %p50 = scmp.eq.s32.totalorder %s12, 1
    %p51 = scmp.ne.s32.totalorder %s46, %s48
    %p52 = scmp.eq.s32.totalorder %s12, 0
    %p53 = por %p51, %p52
    %p54 = scmp.ne.s32.totalorder %s46, %s48
    %p55 = scmp.eq.s32.totalorder %s17, 1
    %p56 = por %p54, %p55
    %p57 = scmp.ne.s32.totalorder %s48, %s49
    %p58 = scmp.eq.s32.totalorder %s17, 0
    %p59 = por %p57, %p58
    %p60 = scmp.ne.s32.totalorder %s48, %s49
    %p61 = scmp.eq.s32.totalorder %s18, 1
    %p62 = por %p60, %p61
    %p64 = scmp.ne.s32.totalorder %s49, %s63
    %p65 = scmp.eq.s32.totalorder %s18, 0
    %p66 = por %p64, %p65
    %s68 = sadd.s32 %s67, 1
    %p71 = scmp.eq.s32.totalorder %s12, 1
    %p72 = scmp.ne.s32.totalorder %s67, %s69
    %p73 = scmp.eq.s32.totalorder %s12, 0
    %p74 = por %p72, %p73
    %p75 = scmp.ne.s32.totalorder %s67, %s69
    %p76 = scmp.eq.s32.totalorder %s17, 1
    %p77 = por %p75, %p76
    %p78 = scmp.ne.s32.totalorder %s69, %s70
    %p79 = scmp.eq.s32.totalorder %s17, 0
    %p80 = por %p78, %p79
    %p81 = scmp.ne.s32.totalorder %s69, %s70
    %p82 = scmp.eq.s32.totalorder %s18, 1
    %p83 = por %p81, %p82
    %p85 = scmp.ne.s32.totalorder %s70, %s84
    %p86 = scmp.eq.s32.totalorder %s18, 0
    %p87 = por %p85, %p86
    %s89 = sadd.s32 %s88, 1
    %p92 = scmp.eq.s32.totalorder %s12, 1
    %p93 = scmp.ne.s32.totalorder %s88, %s90
    %p94 = scmp.eq.s32.totalorder %s12, 0
    %p95 = por %p93, %p94
    %p96 = scmp.ne.s32.totalorder %s88, %s90
    %p97 = scmp.eq.s32.totalorder %s17, 1
    %p98 = por %p96, %p97
    %p99 = scmp.ne.s32.totalorder %s90, %s91
    %p100 = scmp.eq.s32.totalorder %s17, 0
    %p101 = por %p99, %p100
    %p102 = scmp.ne.s32.totalorder %s90, %s91
    %p103 = scmp.eq.s32.totalorder %s18, 1
    %p104 = por %p102, %p103
    %p106 = scmp.ne.s32.totalorder %s91, %s105
    %p107 = scmp.eq.s32.totalorder %s18, 0
    %p108 = por %p106, %p107
    %s110 = sadd.s32 %s109, 1
    %p113 = scmp.eq.s32.totalorder %s12, 1
    %p114 = scmp.ne.s32.totalorder %s109, %s111
    %p115 = scmp.eq.s32.totalorder %s12, 0
    %p116 = por %p114, %p115
    %p117 = scmp.ne.s32.totalorder %s109, %s111
    %p118 = scmp.eq.s32.totalorder %s17, 1
    %p119 = por %p117, %p118
    %p120 = scmp.ne.s32.totalorder %s111, %s112
    %p121 = scmp.eq.s32.totalorder %s17, 0
    %p122 = por %p120, %p121
    %p123 = scmp.ne.s32.totalorder %s111, %s112
    %p124 = scmp.eq.s32.totalorder %s18, 1
    %p125 = por %p123, %p124
    %p127 = scmp.ne.s32.totalorder %s112, %s126
    %p128 = scmp.eq.s32.totalorder %s18, 0
    %p129 = por %p127, %p128
    %s131 = sadd.s32 %s130, 1
    %p134 = scmp.eq.s32.totalorder %s12, 1
    %p135 = scmp.ne.s32.totalorder %s130, %s132
    %p136 = scmp.eq.s32.totalorder %s12, 0
    %p137 = por %p135, %p136
    %p138 = scmp.ne.s32.totalorder %s130, %s132
    %p139 = scmp.eq.s32.totalorder %s17, 1
    %p140 = por %p138, %p139
    %p141 = scmp.ne.s32.totalorder %s132, %s133
    %p142 = scmp.eq.s32.totalorder %s17, 0
    %p143 = por %p141, %p142
    %p144 = scmp.ne.s32.totalorder %s132, %s133
    %p145 = scmp.eq.s32.totalorder %s18, 1
    %p146 = por %p144, %p145
    %p148 = scmp.ne.s32.totalorder %s133, %s147
    %p149 = scmp.eq.s32.totalorder %s18, 0
    %p150 = por %p148, %p149
    %s151 = ssub.s32 %s12, %s19
    %p152 = scmp.eq.s32.totalorder %s151, 0
    %s154 = sadd.s32 %s153, 1
    %s155 = scalar_select %p152, %s153, %s154
    %p158 = pneg %p152
    %p159 = scmp.eq.s32.totalorder %s12, 1
    %p160 = por %p158, %p159
    %p161 = scmp.ne.s32.totalorder %s153, %s156
    %p162 = scmp.eq.s32.totalorder %s12, 0
    %p163 = por %p161, %p162
    %p164 = scmp.ne.s32.totalorder %s153, %s156
    %p165 = scmp.eq.s32.totalorder %s17, 1
    %p166 = por %p164, %p165
    %p167 = scmp.ne.s32.totalorder %s156, %s157
    %p168 = scmp.eq.s32.totalorder %s17, 0
    %p169 = por %p167, %p168
    %p170 = scmp.ne.s32.totalorder %s156, %s157
    %p171 = scmp.eq.s32.totalorder %s18, 1
    %p172 = por %p170, %p171
    %p174 = scmp.ne.s32.totalorder %s157, %s173
    %p175 = scmp.eq.s32.totalorder %s18, 0
    %p176 = por %p174, %p175
    %p177 = scmp.le.s32.totalorder 1, %s12
    %p178 = scmp.lt.s32.totalorder %s12, 3
    %p179 = pnand %p177, %p178
    %p180 = pneg %p179
    // Predicated region
    $region9: #{forward.1} parent=5 // pred_check
      _
    $region10: #{forward.1} parent=5 // pred_check_branch
      %182 = sbr.rel (%p179) target = $region12
    $region11: #{forward.1} parent=5 // pred_region
      %s183 = ssub.s32 %s12, 1
      // Predicated region
      $region13: #{forward.1} parent=11 // pred_check
        %p184 = pneg %p59
      $region14: #{forward.1} parent=11 // pred_check_branch
        %186 = sbr.rel (%p184) target = $region16
      $region15: #{forward.1} parent=11 // pred_region
        _
      $region16: #{forward.1} parent=11 // pred_fallthru
        _
      // Predicated region
      $region17: #{forward.1} parent=11 // pred_check
        %p187 = pneg %p80
      $region18: #{forward.1} parent=11 // pred_check_branch
        %189 = sbr.rel (%p187) target = $region20
      $region19: #{forward.1} parent=11 // pred_region
        _
      $region20: #{forward.1} parent=11 // pred_fallthru
        _
      // Predicated region
      $region21: #{forward.1} parent=11 // pred_check
        %p190 = pneg %p101
      $region22: #{forward.1} parent=11 // pred_check_branch
        %192 = sbr.rel (%p190) target = $region24
      $region23: #{forward.1} parent=11 // pred_region
        _
      $region24: #{forward.1} parent=11 // pred_fallthru
        _
      // Predicated region
      $region25: #{forward.1} parent=11 // pred_check
        %p193 = pneg %p122
      $region26: #{forward.1} parent=11 // pred_check_branch
        %195 = sbr.rel (%p193) target = $region28
      $region27: #{forward.1} parent=11 // pred_region
        _
      $region28: #{forward.1} parent=11 // pred_fallthru
        _
      // Predicated region
      $region29: #{forward.1} parent=11 // pred_check
        %p196 = pneg %p143
      $region30: #{forward.1} parent=11 // pred_check_branch
        %198 = sbr.rel (%p196) target = $region32
      $region31: #{forward.1} parent=11 // pred_region
        _
      $region32: #{forward.1} parent=11 // pred_fallthru
        _
    $region12: #{forward.1} parent=5 // pred_fallthru
      _
    %p199 = scmp.lt.s32.totalorder %s12, 2
    // Predicated region
    $region33: #{forward.1} parent=5 // pred_check
      %p200 = pneg %p199
    $region34: #{forward.1} parent=5 // pred_check_branch
      %202 = sbr.rel (%p200) target = $region36
    $region35: #{forward.1} parent=5 // pred_region
      // Predicated region
      $region37: #{forward.1} parent=35 // pred_check
        %p203 = pneg %p32
      $region38: #{forward.1} parent=35 // pred_check_branch
        %205 = sbr.rel (%p203) target = $region40
      $region39: #{forward.1} parent=35 // pred_region
        %s206 = smul.u32 32, %s12
        %p207 = scmp.lt.s32.totalorder %s206, 63
        %s208 = scalar_select %p207, %s206, 63
        %s209 = smul.addr %s208, 4
        %s210 = scalar_lea.vmem %s0, %s209
        %s211 = smul.u32 32, %s12
      $region40: #{forward.1} parent=35 // pred_fallthru
        _
    $region36: #{forward.1} parent=5 // pred_fallthru
      _
    %p212 = scmp.le.s32.totalorder 1, %s12
    %p213 = scmp.lt.s32.totalorder %s12, 3
    %p214 = pnand %p212, %p213
    %p215 = pneg %p214
    // Predicated region
    $region41: #{forward.1} parent=5 // pred_check
      _
    $region42: #{forward.1} parent=5 // pred_check_branch
      %217 = sbr.rel (%p214) target = $region44
    $region43: #{forward.1} parent=5 // pred_region
      %s218 = ssub.s32 %s12, 1
      %s219 = smul.u32 32, %s17
      %p220 = scmp.lt.s32.totalorder %s219, 63
      %s221 = scalar_select %p220, %s219, 63
      %s222 = smul.addr %s221, 4
      %s223 = scalar_lea.vmem %s0, %s222
      %p224 = pneg %p38
      %p225 = pneg %p35
      %p226 = pneg %p59
      %p227 = pneg %p56
      %p228 = pneg %p80
      %p229 = pneg %p77
      %p230 = pneg %p101
      %p231 = pneg %p98
      %p232 = pneg %p122
      %p233 = pneg %p119
      %p234 = pneg %p143
      %p235 = pneg %p140
      %p236 = pneg %p169
      %p237 = pneg %p166
      %s238 = smul.u32 32, %s17
      %p239 = scmp.lt.s32.totalorder %s238, 63
      %s240 = scalar_select %p239, %s238, 63
      %s241 = smul.addr %s240, 8
      %s242 = scalar_lea.vmem %s6, %s241
      %s243 = smul.u32 32, %s17
      %p244 = scmp.lt.s32.totalorder %s243, 63
      %s245 = scalar_select %p244, %s243, 63
      %s246 = smul.addr %s245, 4
      %s247 = scalar_lea.vmem %s0, %s246
      %s248 = smul.u32 32, %s17
      %s249 = smul.u32 32, %s17
      %p250 = scmp.lt.s32.totalorder %s249, 63
      %s251 = scalar_select %p250, %s249, 63
      %s252 = smul.addr %s251, 8
      %s253 = scalar_lea.vmem %s6, %s252
      %s254 = smul.u32 32, %s17
      %v256 = vld [vmem:[%s247] sm:$0xf]
      %v257 = vld [vmem:[%s247 + $0x4] sm:$0xf]
      %v258 = vld [vmem:[%s247 + $0x8] sm:$0xf]
      %v259 = vld [vmem:[%s247 + $0xc] sm:$0xf]
      %v260 = vld [vmem:[%s247 + $0x10] sm:$0xf]
      %v261 = vld [vmem:[%s247 + $0x14] sm:$0xf]
      %v262 = vld [vmem:[%s247 + $0x18] sm:$0xf]
      %v263 = vld [vmem:[%s247 + $0x1c] sm:$0xf]
      %v264 = vld [vmem:[%s247 + $0x20] sm:$0xf]
      %v265 = vld [vmem:[%s247 + $0x24] sm:$0xf]
      %v266 = vld [vmem:[%s247 + $0x28] sm:$0xf]
      %v267 = vld [vmem:[%s247 + $0x2c] sm:$0xf]
      %v268 = vld [vmem:[%s247 + $0x30] sm:$0xf]
      %v269 = vld [vmem:[%s247 + $0x34] sm:$0xf]
      %v270 = vld [vmem:[%s247 + $0x38] sm:$0xf]
      %v271 = vld [vmem:[%s247 + $0x3c] sm:$0xf]
      %v272 = vld [vmem:[%s247 + $0x40] sm:$0xf]
      %v273 = vld [vmem:[%s247 + $0x44] sm:$0xf]
      %v274 = vld [vmem:[%s247 + $0x48] sm:$0xf]
      %v275 = vld [vmem:[%s247 + $0x4c] sm:$0xf]
      %v276 = vld [vmem:[%s247 + $0x50] sm:$0xf]
      %v277 = vld [vmem:[%s247 + $0x54] sm:$0xf]
      %v278 = vld [vmem:[%s247 + $0x58] sm:$0xf]
      %v279 = vld [vmem:[%s247 + $0x5c] sm:$0xf]
      %v280 = vld [vmem:[%s247 + $0x60] sm:$0xf]
      %v281 = vld [vmem:[%s247 + $0x64] sm:$0xf]
      %v282 = vld [vmem:[%s247 + $0x68] sm:$0xf]
      %v283 = vld [vmem:[%s247 + $0x6c] sm:$0xf]
      %v284 = vld [vmem:[%s247 + $0x70] sm:$0xf]
      %v285 = vld [vmem:[%s247 + $0x74] sm:$0xf]
      %v286 = vld [vmem:[%s247 + $0x78] sm:$0xf]
      %v287 = vld [vmem:[%s247 + $0x7c] sm:$0xf]
      %v288 = vld [vmem:[%s2] sm:$0xf]
      %v289 = vld [vmem:[%s2 + $0x4] sm:$0xf]
      %v290 = vld [vmem:[%s2 + $0x8] sm:$0xf]
      %v291 = vld [vmem:[%s2 + $0xc] sm:$0xf]
      %v292 = vld [vmem:[%s1] sm:$0x1]
      %v294 = vperm.slane %v292, 0
      %v328 = vunpack.c.l.b16 %v256
      %v329 = vunpack.c.l.b16 %v257
      %v330 = vunpack.c.l.b16 %v258
      %v331 = vunpack.c.l.b16 %v259
      %v332 = vunpack.c.l.b16 %v260
      %v333 = vunpack.c.l.b16 %v261
      %v334 = vunpack.c.l.b16 %v262
      %v335 = vunpack.c.l.b16 %v263
      %v336 = vunpack.c.l.b16 %v264
      %v337 = vunpack.c.l.b16 %v265
      %v338 = vunpack.c.l.b16 %v266
      %v339 = vunpack.c.l.b16 %v267
      %v340 = vunpack.c.l.b16 %v268
      %v341 = vunpack.c.l.b16 %v269
      %v342 = vunpack.c.l.b16 %v270
      %v343 = vunpack.c.l.b16 %v271
      %v344 = vunpack.c.l.b16 %v272
      %v345 = vunpack.c.l.b16 %v273
      %v346 = vunpack.c.l.b16 %v274
      %v347 = vunpack.c.l.b16 %v275
      %v348 = vunpack.c.l.b16 %v276
      %v349 = vunpack.c.l.b16 %v277
      %v350 = vunpack.c.l.b16 %v278
      %v351 = vunpack.c.l.b16 %v279
      %v352 = vunpack.c.l.b16 %v280
      %v353 = vunpack.c.l.b16 %v281
      %v354 = vunpack.c.l.b16 %v282
      %v355 = vunpack.c.l.b16 %v283
      %v356 = vunpack.c.l.b16 %v284
      %v357 = vunpack.c.l.b16 %v285
      %v358 = vunpack.c.l.b16 %v286
      %v359 = vunpack.c.l.b16 %v287
      %v360 = vpack.c.b16 %v329, %v328
      %v361 = vpack.c.b16 %v331, %v330
      %v362 = vpack.c.b16 %v333, %v332
      %v363 = vpack.c.b16 %v335, %v334
      %v364 = vpack.c.b16 %v337, %v336
      %v365 = vpack.c.b16 %v339, %v338
      %v366 = vpack.c.b16 %v341, %v340
      %v367 = vpack.c.b16 %v343, %v342
      %v368 = vpack.c.b16 %v345, %v344
      %v369 = vpack.c.b16 %v347, %v346
      %v370 = vpack.c.b16 %v349, %v348
      %v371 = vpack.c.b16 %v351, %v350
      %v372 = vpack.c.b16 %v353, %v352
      %v373 = vpack.c.b16 %v355, %v354
      %v374 = vpack.c.b16 %v357, %v356
      %v375 = vpack.c.b16 %v359, %v358
      %v380 = vunpack.c.l.b16 %v288
      %v381 = vunpack.c.l.b16 %v289
      %v382 = vunpack.c.l.b16 %v290
      %v383 = vunpack.c.l.b16 %v291
      %v384 = vpack.c.b16 %v381, %v380
      %v385 = vpack.c.b16 %v383, %v382
      %vm388 = vcmask 261120
      %v390 = vsel %vm388, %v360, 0
      %v393 = vsel %vm388, %v361, 0
      %v396 = vsel %vm388, %v362, 0
      %v399 = vsel %vm388, %v363, 0
      %v402 = vsel %vm388, %v364, 0
      %v405 = vsel %vm388, %v365, 0
      %v408 = vsel %vm388, %v366, 0
      %v411 = vsel %vm388, %v367, 0
      %v414 = vsel %vm388, %v368, 0
      %v417 = vsel %vm388, %v369, 0
      %v420 = vsel %vm388, %v370, 0
      %v423 = vsel %vm388, %v371, 0
      %v426 = vsel %vm388, %v372, 0
      %v429 = vsel %vm388, %v373, 0
      %v432 = vsel %vm388, %v374, 0
      %v435 = vsel %vm388, %v375, 0
      %437 = vmatpush.bf16.msra.mxu0 0
      %438 = vmatpush.bf16.msra.mxu0 0
      %439 = vmatpush.bf16.msra.mxu0 0
      %440 = vmatpush.bf16.msra.mxu0 0
      %441 = vmatpush.bf16.msra.mxu0 0
      %442 = vmatpush.bf16.msra.mxu0 0
      %443 = vmatpush.bf16.msra.mxu0 %v385
      %444 = vmatpush.bf16.msra.mxu0 %v384
      %445 = vmatmul.bf16.gmra.mxu0 %v390
      %v446 = vpop.f32.mrf.mxu0
      %v447 = vadd.f32 %v294, %v446
      %v448 = vpop.f32.mrf.mxu0
      %v449 = vadd.f32 %v294, %v448
      %450 = vmatmul.bf16.gmra.mxu0 %v393
      %v451 = vpop.f32.mrf.mxu0
      %v452 = vadd.f32 %v294, %v451
      %v453 = vpop.f32.mrf.mxu0
      %v454 = vadd.f32 %v294, %v453
      %455 = vmatmul.bf16.gmra.mxu0 %v396
      %v456 = vpop.f32.mrf.mxu0
      %v457 = vadd.f32 %v294, %v456
      %v458 = vpop.f32.mrf.mxu0
      %v459 = vadd.f32 %v294, %v458
      %460 = vmatmul.bf16.gmra.mxu0 %v399
      %v461 = vpop.f32.mrf.mxu0
      %v462 = vadd.f32 %v294, %v461
      %v463 = vpop.f32.mrf.mxu0
      %v464 = vadd.f32 %v294, %v463
      %465 = vmatmul.bf16.gmra.mxu0 %v402
      %v466 = vpop.f32.mrf.mxu0
      %v467 = vadd.f32 %v294, %v466
      %v468 = vpop.f32.mrf.mxu0
      %v469 = vadd.f32 %v294, %v468
      %470 = vmatmul.bf16.gmra.mxu0 %v405
      %v471 = vpop.f32.mrf.mxu0
      %v472 = vadd.f32 %v294, %v471
      %v473 = vpop.f32.mrf.mxu0
      %v474 = vadd.f32 %v294, %v473
      %475 = vmatmul.bf16.gmra.mxu0 %v408
      %v476 = vpop.f32.mrf.mxu0
      %v477 = vadd.f32 %v294, %v476
      %v478 = vpop.f32.mrf.mxu0
      %v479 = vadd.f32 %v294, %v478
      %480 = vmatmul.bf16.gmra.mxu0 %v411
      %v481 = vpop.f32.mrf.mxu0
      %v482 = vadd.f32 %v294, %v481
      %v483 = vpop.f32.mrf.mxu0
      %v484 = vadd.f32 %v294, %v483
      %485 = vmatmul.bf16.gmra.mxu0 %v414
      %v486 = vpop.f32.mrf.mxu0
      %v487 = vadd.f32 %v294, %v486
      %v488 = vpop.f32.mrf.mxu0
      %v489 = vadd.f32 %v294, %v488
      %490 = vmatmul.bf16.gmra.mxu0 %v417
      %v491 = vpop.f32.mrf.mxu0
      %v492 = vadd.f32 %v294, %v491
      %v493 = vpop.f32.mrf.mxu0
      %v494 = vadd.f32 %v294, %v493
      %495 = vmatmul.bf16.gmra.mxu0 %v420
      %v496 = vpop.f32.mrf.mxu0
      %v497 = vadd.f32 %v294, %v496
      %v498 = vpop.f32.mrf.mxu0
      %v499 = vadd.f32 %v294, %v498
      %500 = vmatmul.bf16.gmra.mxu0 %v423
      %v501 = vpop.f32.mrf.mxu0
      %v502 = vadd.f32 %v294, %v501
      %v503 = vpop.f32.mrf.mxu0
      %v504 = vadd.f32 %v294, %v503
      %505 = vmatmul.bf16.gmra.mxu0 %v426
      %v506 = vpop.f32.mrf.mxu0
      %v507 = vadd.f32 %v294, %v506
      %v508 = vpop.f32.mrf.mxu0
      %v509 = vadd.f32 %v294, %v508
      %510 = vmatmul.bf16.gmra.mxu0 %v429
      %v511 = vpop.f32.mrf.mxu0
      %v512 = vadd.f32 %v294, %v511
      %v513 = vpop.f32.mrf.mxu0
      %v514 = vadd.f32 %v294, %v513
      %515 = vmatmul.bf16.gmra.mxu0 %v432
      %v516 = vpop.f32.mrf.mxu0
      %v517 = vadd.f32 %v294, %v516
      %v518 = vpop.f32.mrf.mxu0
      %v519 = vadd.f32 %v294, %v518
      %520 = vmatmul.bf16.gmra.mxu0 %v435
      %v521 = vpop.f32.mrf.mxu0
      %v522 = vadd.f32 %v294, %v521
      %v523 = vpop.f32.mrf.mxu0
      %v524 = vadd.f32 %v294, %v523
      %525 = vdwg.mxu0
      %vm526 = vcmp.gt.f32.partialorder %v447, 0.0
      %vm527 = vcmp.gt.f32.partialorder %v449, 0.0
      %vm528 = vcmp.gt.f32.partialorder %v452, 0.0
      %vm529 = vcmp.gt.f32.partialorder %v454, 0.0
      %vm530 = vcmp.gt.f32.partialorder %v457, 0.0
      %vm531 = vcmp.gt.f32.partialorder %v459, 0.0
      %vm532 = vcmp.gt.f32.partialorder %v462, 0.0
      %vm533 = vcmp.gt.f32.partialorder %v464, 0.0
      %vm534 = vcmp.gt.f32.partialorder %v467, 0.0
      %vm535 = vcmp.gt.f32.partialorder %v469, 0.0
      %vm536 = vcmp.gt.f32.partialorder %v472, 0.0
      %vm537 = vcmp.gt.f32.partialorder %v474, 0.0
      %vm538 = vcmp.gt.f32.partialorder %v477, 0.0
      %vm539 = vcmp.gt.f32.partialorder %v479, 0.0
      %vm540 = vcmp.gt.f32.partialorder %v482, 0.0
      %vm541 = vcmp.gt.f32.partialorder %v484, 0.0
      %vm542 = vcmp.gt.f32.partialorder %v487, 0.0
      %vm543 = vcmp.gt.f32.partialorder %v489, 0.0
      %vm544 = vcmp.gt.f32.partialorder %v492, 0.0
      %vm545 = vcmp.gt.f32.partialorder %v494, 0.0
      %vm546 = vcmp.gt.f32.partialorder %v497, 0.0
      %vm547 = vcmp.gt.f32.partialorder %v499, 0.0
      %vm548 = vcmp.gt.f32.partialorder %v502, 0.0
      %vm549 = vcmp.gt.f32.partialorder %v504, 0.0
      %vm550 = vcmp.gt.f32.partialorder %v507, 0.0
      %vm551 = vcmp.gt.f32.partialorder %v509, 0.0
      %vm552 = vcmp.gt.f32.partialorder %v512, 0.0
      %vm553 = vcmp.gt.f32.partialorder %v514, 0.0
      %vm554 = vcmp.gt.f32.partialorder %v517, 0.0
      %vm555 = vcmp.gt.f32.partialorder %v519, 0.0
      %vm556 = vcmp.gt.f32.partialorder %v522, 0.0
      %vm557 = vcmp.gt.f32.partialorder %v524, 0.0
      %v558 = vmul.f32 %v447, 0.1
      %v559 = vmul.f32 %v449, 0.1
      %v560 = vmul.f32 %v452, 0.1
      %v561 = vmul.f32 %v454, 0.1
      %v562 = vmul.f32 %v457, 0.1
      %v563 = vmul.f32 %v459, 0.1
      %v564 = vmul.f32 %v462, 0.1
      %v565 = vmul.f32 %v464, 0.1
      %v566 = vmul.f32 %v467, 0.1
      %v567 = vmul.f32 %v469, 0.1
      %v568 = vmul.f32 %v472, 0.1
      %v569 = vmul.f32 %v474, 0.1
      %v570 = vmul.f32 %v477, 0.1
      %v571 = vmul.f32 %v479, 0.1
      %v572 = vmul.f32 %v482, 0.1
      %v573 = vmul.f32 %v484, 0.1
      %v574 = vmul.f32 %v487, 0.1
      %v575 = vmul.f32 %v489, 0.1
      %v576 = vmul.f32 %v492, 0.1
      %v577 = vmul.f32 %v494, 0.1
      %v578 = vmul.f32 %v497, 0.1
      %v579 = vmul.f32 %v499, 0.1
      %v580 = vmul.f32 %v502, 0.1
      %v581 = vmul.f32 %v504, 0.1
      %v582 = vmul.f32 %v507, 0.1
      %v583 = vmul.f32 %v509, 0.1
      %v584 = vmul.f32 %v512, 0.1
      %v585 = vmul.f32 %v514, 0.1
      %v586 = vmul.f32 %v517, 0.1
      %v587 = vmul.f32 %v519, 0.1
      %v588 = vmul.f32 %v522, 0.1
      %v589 = vmul.f32 %v524, 0.1
      %v590 = vsel %vm526, %v447, %v558
      %v591 = vsel %vm527, %v449, %v559
      %v592 = vsel %vm528, %v452, %v560
      %v593 = vsel %vm529, %v454, %v561
      %v594 = vsel %vm530, %v457, %v562
      %v595 = vsel %vm531, %v459, %v563
      %v596 = vsel %vm532, %v462, %v564
      %v597 = vsel %vm533, %v464, %v565
      %v598 = vsel %vm534, %v467, %v566
      %v599 = vsel %vm535, %v469, %v567
      %v600 = vsel %vm536, %v472, %v568
      %v601 = vsel %vm537, %v474, %v569
      %v602 = vsel %vm538, %v477, %v570
      %v603 = vsel %vm539, %v479, %v571
      %v604 = vsel %vm540, %v482, %v572
      %v605 = vsel %vm541, %v484, %v573
      %v606 = vsel %vm542, %v487, %v574
      %v607 = vsel %vm543, %v489, %v575
      %v608 = vsel %vm544, %v492, %v576
      %v609 = vsel %vm545, %v494, %v577
      %v610 = vsel %vm546, %v497, %v578
      %v611 = vsel %vm547, %v499, %v579
      %v612 = vsel %vm548, %v502, %v580
      %v613 = vsel %vm549, %v504, %v581
      %v614 = vsel %vm550, %v507, %v582
      %v615 = vsel %vm551, %v509, %v583
      %v616 = vsel %vm552, %v512, %v584
      %v617 = vsel %vm553, %v514, %v585
      %v618 = vsel %vm554, %v517, %v586
      %v619 = vsel %vm555, %v519, %v587
      %v620 = vsel %vm556, %v522, %v588
      %v621 = vsel %vm557, %v524, %v589
      %v622 = vpack.c.bf16 %v591, %v590
      %v623 = vpack.c.bf16 %v593, %v592
      %v624 = vpack.c.bf16 %v595, %v594
      %v625 = vpack.c.bf16 %v597, %v596
      %v626 = vpack.c.bf16 %v599, %v598
      %v627 = vpack.c.bf16 %v601, %v600
      %v628 = vpack.c.bf16 %v603, %v602
      %v629 = vpack.c.bf16 %v605, %v604
      %v630 = vpack.c.bf16 %v607, %v606
      %v631 = vpack.c.bf16 %v609, %v608
      %v632 = vpack.c.bf16 %v611, %v610
      %v633 = vpack.c.bf16 %v613, %v612
      %v634 = vpack.c.bf16 %v615, %v614
      %v635 = vpack.c.bf16 %v617, %v616
      %v636 = vpack.c.bf16 %v619, %v618
      %v637 = vpack.c.bf16 %v621, %v620
      %v638 = vld [vmem:[%s3] sm:$0xf]
      %v639 = vld [vmem:[%s3 + $0x4] sm:$0xf]
      %v640 = vld [vmem:[%s3 + $0x8] sm:$0xf]
      %v641 = vld [vmem:[%s3 + $0xc] sm:$0xf]
      %v642 = vld [vmem:[%s3 + $0x10] sm:$0xf]
      %v643 = vld [vmem:[%s3 + $0x14] sm:$0xf]
      %v644 = vld [vmem:[%s3 + $0x18] sm:$0xf]
      %v645 = vld [vmem:[%s3 + $0x1c] sm:$0xf]
      %v646 = vld [vmem:[%s3 + $0x20] sm:$0xf]
      %v647 = vld [vmem:[%s3 + $0x24] sm:$0xf]
      %v648 = vld [vmem:[%s3 + $0x28] sm:$0xf]
      %v649 = vld [vmem:[%s3 + $0x2c] sm:$0xf]
      %v650 = vld [vmem:[%s3 + $0x30] sm:$0xf]
      %v651 = vld [vmem:[%s3 + $0x34] sm:$0xf]
      %v652 = vld [vmem:[%s3 + $0x38] sm:$0xf]
      %v653 = vld [vmem:[%s3 + $0x3c] sm:$0xf]
      %v654 = vld [vmem:[%s1 + $0x1] sm:$0x1]
      %v656 = vperm.slane %v654, 0
      %v674 = vunpack.c.l.b16 %v638
      %v675 = vunpack.c.l.b16 %v639
      %v676 = vunpack.c.l.b16 %v640
      %v677 = vunpack.c.l.b16 %v641
      %v678 = vunpack.c.l.b16 %v642
      %v679 = vunpack.c.l.b16 %v643
      %v680 = vunpack.c.l.b16 %v644
      %v681 = vunpack.c.l.b16 %v645
      %v682 = vunpack.c.l.b16 %v646
      %v683 = vunpack.c.l.b16 %v647
      %v684 = vunpack.c.l.b16 %v648
      %v685 = vunpack.c.l.b16 %v649
      %v686 = vunpack.c.l.b16 %v650
      %v687 = vunpack.c.l.b16 %v651
      %v688 = vunpack.c.l.b16 %v652
      %v689 = vunpack.c.l.b16 %v653
      %v690 = vpack.c.b16 %v675, %v674
      %v691 = vpack.c.b16 %v677, %v676
      %v692 = vpack.c.b16 %v679, %v678
      %v693 = vpack.c.b16 %v681, %v680
      %v694 = vpack.c.b16 %v683, %v682
      %v695 = vpack.c.b16 %v685, %v684
      %v696 = vpack.c.b16 %v687, %v686
      %v697 = vpack.c.b16 %v689, %v688
      %706 = vmatpush.bf16.msra.mxu0 %v697
      %707 = vmatpush.bf16.msra.mxu0 %v696
      %708 = vmatpush.bf16.msra.mxu0 %v695
      %709 = vmatpush.bf16.msra.mxu0 %v694
      %710 = vmatpush.bf16.msra.mxu0 %v693
      %711 = vmatpush.bf16.msra.mxu0 %v692
      %712 = vmatpush.bf16.msra.mxu0 %v691
      %713 = vmatpush.bf16.msra.mxu0 %v690
      %714 = vmatmul.bf16.gmra.mxu0 %v622
      %v715 = vpop.f32.mrf.mxu0
      %v716 = vadd.f32 %v656, %v715
      %v717 = vpop.f32.mrf.mxu0
      %v718 = vadd.f32 %v656, %v717
      %719 = vmatmul.bf16.gmra.mxu0 %v623
      %v720 = vpop.f32.mrf.mxu0
      %v721 = vadd.f32 %v656, %v720
      %v722 = vpop.f32.mrf.mxu0
      %v723 = vadd.f32 %v656, %v722
      %724 = vmatmul.bf16.gmra.mxu0 %v624
      %v725 = vpop.f32.mrf.mxu0
      %v726 = vadd.f32 %v656, %v725
      %v727 = vpop.f32.mrf.mxu0
      %v728 = vadd.f32 %v656, %v727
      %729 = vmatmul.bf16.gmra.mxu0 %v625
      %v730 = vpop.f32.mrf.mxu0
      %v731 = vadd.f32 %v656, %v730
      %v732 = vpop.f32.mrf.mxu0
      %v733 = vadd.f32 %v656, %v732
      %734 = vmatmul.bf16.gmra.mxu0 %v626
      %v735 = vpop.f32.mrf.mxu0
      %v736 = vadd.f32 %v656, %v735
      %v737 = vpop.f32.mrf.mxu0
      %v738 = vadd.f32 %v656, %v737
      %739 = vmatmul.bf16.gmra.mxu0 %v627
      %v740 = vpop.f32.mrf.mxu0
      %v741 = vadd.f32 %v656, %v740
      %v742 = vpop.f32.mrf.mxu0
      %v743 = vadd.f32 %v656, %v742
      %744 = vmatmul.bf16.gmra.mxu0 %v628
      %v745 = vpop.f32.mrf.mxu0
      %v746 = vadd.f32 %v656, %v745
      %v747 = vpop.f32.mrf.mxu0
      %v748 = vadd.f32 %v656, %v747
      %749 = vmatmul.bf16.gmra.mxu0 %v629
      %v750 = vpop.f32.mrf.mxu0
      %v751 = vadd.f32 %v656, %v750
      %v752 = vpop.f32.mrf.mxu0
      %v753 = vadd.f32 %v656, %v752
      %754 = vmatmul.bf16.gmra.mxu0 %v630
      %v755 = vpop.f32.mrf.mxu0
      %v756 = vadd.f32 %v656, %v755
      %v757 = vpop.f32.mrf.mxu0
      %v758 = vadd.f32 %v656, %v757
      %759 = vmatmul.bf16.gmra.mxu0 %v631
      %v760 = vpop.f32.mrf.mxu0
      %v761 = vadd.f32 %v656, %v760
      %v762 = vpop.f32.mrf.mxu0
      %v763 = vadd.f32 %v656, %v762
      %764 = vmatmul.bf16.gmra.mxu0 %v632
      %v765 = vpop.f32.mrf.mxu0
      %v766 = vadd.f32 %v656, %v765
      %v767 = vpop.f32.mrf.mxu0
      %v768 = vadd.f32 %v656, %v767
      %769 = vmatmul.bf16.gmra.mxu0 %v633
      %v770 = vpop.f32.mrf.mxu0
      %v771 = vadd.f32 %v656, %v770
      %v772 = vpop.f32.mrf.mxu0
      %v773 = vadd.f32 %v656, %v772
      %774 = vmatmul.bf16.gmra.mxu0 %v634
      %v775 = vpop.f32.mrf.mxu0
      %v776 = vadd.f32 %v656, %v775
      %v777 = vpop.f32.mrf.mxu0
      %v778 = vadd.f32 %v656, %v777
      %779 = vmatmul.bf16.gmra.mxu0 %v635
      %v780 = vpop.f32.mrf.mxu0
      %v781 = vadd.f32 %v656, %v780
      %v782 = vpop.f32.mrf.mxu0
      %v783 = vadd.f32 %v656, %v782
      %784 = vmatmul.bf16.gmra.mxu0 %v636
      %v785 = vpop.f32.mrf.mxu0
      %v786 = vadd.f32 %v656, %v785
      %v787 = vpop.f32.mrf.mxu0
      %v788 = vadd.f32 %v656, %v787
      %789 = vmatmul.bf16.gmra.mxu0 %v637
      %v790 = vpop.f32.mrf.mxu0
      %v791 = vadd.f32 %v656, %v790
      %v792 = vpop.f32.mrf.mxu0
      %v793 = vadd.f32 %v656, %v792
      %794 = vdwg.mxu0
      %vm795 = vcmp.gt.f32.partialorder %v716, 0.0
      %vm796 = vcmp.gt.f32.partialorder %v718, 0.0
      %vm797 = vcmp.gt.f32.partialorder %v721, 0.0
      %vm798 = vcmp.gt.f32.partialorder %v723, 0.0
      %vm799 = vcmp.gt.f32.partialorder %v726, 0.0
      %vm800 = vcmp.gt.f32.partialorder %v728, 0.0
      %vm801 = vcmp.gt.f32.partialorder %v731, 0.0
      %vm802 = vcmp.gt.f32.partialorder %v733, 0.0
      %vm803 = vcmp.gt.f32.partialorder %v736, 0.0
      %vm804 = vcmp.gt.f32.partialorder %v738, 0.0
      %vm805 = vcmp.gt.f32.partialorder %v741, 0.0
      %vm806 = vcmp.gt.f32.partialorder %v743, 0.0
      %vm807 = vcmp.gt.f32.partialorder %v746, 0.0
      %vm808 = vcmp.gt.f32.partialorder %v748, 0.0
      %vm809 = vcmp.gt.f32.partialorder %v751, 0.0
      %vm810 = vcmp.gt.f32.partialorder %v753, 0.0
      %vm811 = vcmp.gt.f32.partialorder %v756, 0.0
      %vm812 = vcmp.gt.f32.partialorder %v758, 0.0
      %vm813 = vcmp.gt.f32.partialorder %v761, 0.0
      %vm814 = vcmp.gt.f32.partialorder %v763, 0.0
      %vm815 = vcmp.gt.f32.partialorder %v766, 0.0
      %vm816 = vcmp.gt.f32.partialorder %v768, 0.0
      %vm817 = vcmp.gt.f32.partialorder %v771, 0.0
      %vm818 = vcmp.gt.f32.partialorder %v773, 0.0
      %vm819 = vcmp.gt.f32.partialorder %v776, 0.0
      %vm820 = vcmp.gt.f32.partialorder %v778, 0.0
      %vm821 = vcmp.gt.f32.partialorder %v781, 0.0
      %vm822 = vcmp.gt.f32.partialorder %v783, 0.0
      %vm823 = vcmp.gt.f32.partialorder %v786, 0.0
      %vm824 = vcmp.gt.f32.partialorder %v788, 0.0
      %vm825 = vcmp.gt.f32.partialorder %v791, 0.0
      %vm826 = vcmp.gt.f32.partialorder %v793, 0.0
      %v827 = vmul.f32 %v716, 0.1
      %v828 = vmul.f32 %v718, 0.1
      %v829 = vmul.f32 %v721, 0.1
      %v830 = vmul.f32 %v723, 0.1
      %v831 = vmul.f32 %v726, 0.1
      %v832 = vmul.f32 %v728, 0.1
      %v833 = vmul.f32 %v731, 0.1
      %v834 = vmul.f32 %v733, 0.1
      %v835 = vmul.f32 %v736, 0.1
      %v836 = vmul.f32 %v738, 0.1
      %v837 = vmul.f32 %v741, 0.1
      %v838 = vmul.f32 %v743, 0.1
      %v839 = vmul.f32 %v746, 0.1
      %v840 = vmul.f32 %v748, 0.1
      %v841 = vmul.f32 %v751, 0.1
      %v842 = vmul.f32 %v753, 0.1
      %v843 = vmul.f32 %v756, 0.1
      %v844 = vmul.f32 %v758, 0.1
      %v845 = vmul.f32 %v761, 0.1
      %v846 = vmul.f32 %v763, 0.1
      %v847 = vmul.f32 %v766, 0.1
      %v848 = vmul.f32 %v768, 0.1
      %v849 = vmul.f32 %v771, 0.1
      %v850 = vmul.f32 %v773, 0.1
      %v851 = vmul.f32 %v776, 0.1
      %v852 = vmul.f32 %v778, 0.1
      %v853 = vmul.f32 %v781, 0.1
      %v854 = vmul.f32 %v783, 0.1
      %v855 = vmul.f32 %v786, 0.1
      %v856 = vmul.f32 %v788, 0.1
      %v857 = vmul.f32 %v791, 0.1
      %v858 = vmul.f32 %v793, 0.1
      %v859 = vsel %vm795, %v716, %v827
      %v860 = vsel %vm796, %v718, %v828
      %v861 = vsel %vm797, %v721, %v829
      %v862 = vsel %vm798, %v723, %v830
      %v863 = vsel %vm799, %v726, %v831
      %v864 = vsel %vm800, %v728, %v832
      %v865 = vsel %vm801, %v731, %v833
      %v866 = vsel %vm802, %v733, %v834
      %v867 = vsel %vm803, %v736, %v835
      %v868 = vsel %vm804, %v738, %v836
      %v869 = vsel %vm805, %v741, %v837
      %v870 = vsel %vm806, %v743, %v838
      %v871 = vsel %vm807, %v746, %v839
      %v872 = vsel %vm808, %v748, %v840
      %v873 = vsel %vm809, %v751, %v841
      %v874 = vsel %vm810, %v753, %v842
      %v875 = vsel %vm811, %v756, %v843
      %v876 = vsel %vm812, %v758, %v844
      %v877 = vsel %vm813, %v761, %v845
      %v878 = vsel %vm814, %v763, %v846
      %v879 = vsel %vm815, %v766, %v847
      %v880 = vsel %vm816, %v768, %v848
      %v881 = vsel %vm817, %v771, %v849
      %v882 = vsel %vm818, %v773, %v850
      %v883 = vsel %vm819, %v776, %v851
      %v884 = vsel %vm820, %v778, %v852
      %v885 = vsel %vm821, %v781, %v853
      %v886 = vsel %vm822, %v783, %v854
      %v887 = vsel %vm823, %v786, %v855
      %v888 = vsel %vm824, %v788, %v856
      %v889 = vsel %vm825, %v791, %v857
      %v890 = vsel %vm826, %v793, %v858
      %v891 = vpack.c.bf16 %v860, %v859
      %v892 = vpack.c.bf16 %v862, %v861
      %v893 = vpack.c.bf16 %v864, %v863
      %v894 = vpack.c.bf16 %v866, %v865
      %v895 = vpack.c.bf16 %v868, %v867
      %v896 = vpack.c.bf16 %v870, %v869
      %v897 = vpack.c.bf16 %v872, %v871
      %v898 = vpack.c.bf16 %v874, %v873
      %v899 = vpack.c.bf16 %v876, %v875
      %v900 = vpack.c.bf16 %v878, %v877
      %v901 = vpack.c.bf16 %v880, %v879
      %v902 = vpack.c.bf16 %v882, %v881
      %v903 = vpack.c.bf16 %v884, %v883
      %v904 = vpack.c.bf16 %v886, %v885
      %v905 = vpack.c.bf16 %v888, %v887
      %v906 = vpack.c.bf16 %v890, %v889
      %v907 = vld [vmem:[%s4] sm:$0xf]
      %v908 = vld [vmem:[%s4 + $0x4] sm:$0xf]
      %v909 = vld [vmem:[%s4 + $0x8] sm:$0xf]
      %v910 = vld [vmem:[%s4 + $0xc] sm:$0xf]
      %v911 = vld [vmem:[%s4 + $0x10] sm:$0xf]
      %v912 = vld [vmem:[%s4 + $0x14] sm:$0xf]
      %v913 = vld [vmem:[%s4 + $0x18] sm:$0xf]
      %v914 = vld [vmem:[%s4 + $0x1c] sm:$0xf]
      %v915 = vld [vmem:[%s4 + $0x20] sm:$0xf]
      %v916 = vld [vmem:[%s4 + $0x24] sm:$0xf]
      %v917 = vld [vmem:[%s4 + $0x28] sm:$0xf]
      %v918 = vld [vmem:[%s4 + $0x2c] sm:$0xf]
      %v919 = vld [vmem:[%s4 + $0x30] sm:$0xf]
      %v920 = vld [vmem:[%s4 + $0x34] sm:$0xf]
      %v921 = vld [vmem:[%s4 + $0x38] sm:$0xf]
      %v922 = vld [vmem:[%s4 + $0x3c] sm:$0xf]
      %v923 = vld [vmem:[%s1 + $0x2] sm:$0x1]
      %v925 = vperm.slane %v923, 0
      %v943 = vunpack.c.l.b16 %v907
      %v944 = vunpack.c.l.b16 %v908
      %v945 = vunpack.c.l.b16 %v909
      %v946 = vunpack.c.l.b16 %v910
      %v947 = vunpack.c.l.b16 %v911
      %v948 = vunpack.c.l.b16 %v912
      %v949 = vunpack.c.l.b16 %v913
      %v950 = vunpack.c.l.b16 %v914
      %v951 = vunpack.c.l.b16 %v915
      %v952 = vunpack.c.l.b16 %v916
      %v953 = vunpack.c.l.b16 %v917
      %v954 = vunpack.c.l.b16 %v918
      %v955 = vunpack.c.l.b16 %v919
      %v956 = vunpack.c.l.b16 %v920
      %v957 = vunpack.c.l.b16 %v921
      %v958 = vunpack.c.l.b16 %v922
      %v959 = vpack.c.b16 %v944, %v943
      %v960 = vpack.c.b16 %v946, %v945
      %v961 = vpack.c.b16 %v948, %v947
      %v962 = vpack.c.b16 %v950, %v949
      %v963 = vpack.c.b16 %v952, %v951
      %v964 = vpack.c.b16 %v954, %v953
      %v965 = vpack.c.b16 %v956, %v955
      %v966 = vpack.c.b16 %v958, %v957
      %975 = vmatpush.bf16.msra.mxu0 %v966
      %976 = vmatpush.bf16.msra.mxu0 %v965
      %977 = vmatpush.bf16.msra.mxu0 %v964
      %978 = vmatpush.bf16.msra.mxu0 %v963
      %979 = vmatpush.bf16.msra.mxu0 %v962
      %980 = vmatpush.bf16.msra.mxu0 %v961
      %981 = vmatpush.bf16.msra.mxu0 %v960
      %982 = vmatpush.bf16.msra.mxu0 %v959
      %983 = vmatmul.bf16.gmra.mxu0 %v891
      %v984 = vpop.f32.mrf.mxu0
      %v985 = vadd.f32 %v925, %v984
      %v986 = vpop.f32.mrf.mxu0
      %v987 = vadd.f32 %v925, %v986
      %988 = vmatmul.bf16.gmra.mxu0 %v892
      %v989 = vpop.f32.mrf.mxu0
      %v990 = vadd.f32 %v925, %v989
      %v991 = vpop.f32.mrf.mxu0
      %v992 = vadd.f32 %v925, %v991
      %993 = vmatmul.bf16.gmra.mxu0 %v893
      %v994 = vpop.f32.mrf.mxu0
      %v995 = vadd.f32 %v925, %v994
      %v996 = vpop.f32.mrf.mxu0
      %v997 = vadd.f32 %v925, %v996
      %998 = vmatmul.bf16.gmra.mxu0 %v894
      %v999 = vpop.f32.mrf.mxu0
      %v1000 = vadd.f32 %v925, %v999
      %v1001 = vpop.f32.mrf.mxu0
      %v1002 = vadd.f32 %v925, %v1001
      %1003 = vmatmul.bf16.gmra.mxu0 %v895
      %v1004 = vpop.f32.mrf.mxu0
      %v1005 = vadd.f32 %v925, %v1004
      %v1006 = vpop.f32.mrf.mxu0
      %v1007 = vadd.f32 %v925, %v1006
      %1008 = vmatmul.bf16.gmra.mxu0 %v896
      %v1009 = vpop.f32.mrf.mxu0
      %v1010 = vadd.f32 %v925, %v1009
      %v1011 = vpop.f32.mrf.mxu0
      %v1012 = vadd.f32 %v925, %v1011
      %1013 = vmatmul.bf16.gmra.mxu0 %v897
      %v1014 = vpop.f32.mrf.mxu0
      %v1015 = vadd.f32 %v925, %v1014
      %v1016 = vpop.f32.mrf.mxu0
      %v1017 = vadd.f32 %v925, %v1016
      %1018 = vmatmul.bf16.gmra.mxu0 %v898
      %v1019 = vpop.f32.mrf.mxu0
      %v1020 = vadd.f32 %v925, %v1019
      %v1021 = vpop.f32.mrf.mxu0
      %v1022 = vadd.f32 %v925, %v1021
      %1023 = vmatmul.bf16.gmra.mxu0 %v899
      %v1024 = vpop.f32.mrf.mxu0
      %v1025 = vadd.f32 %v925, %v1024
      %v1026 = vpop.f32.mrf.mxu0
      %v1027 = vadd.f32 %v925, %v1026
      %1028 = vmatmul.bf16.gmra.mxu0 %v900
      %v1029 = vpop.f32.mrf.mxu0
      %v1030 = vadd.f32 %v925, %v1029
      %v1031 = vpop.f32.mrf.mxu0
      %v1032 = vadd.f32 %v925, %v1031
      %1033 = vmatmul.bf16.gmra.mxu0 %v901
      %v1034 = vpop.f32.mrf.mxu0
      %v1035 = vadd.f32 %v925, %v1034
      %v1036 = vpop.f32.mrf.mxu0
      %v1037 = vadd.f32 %v925, %v1036
      %1038 = vmatmul.bf16.gmra.mxu0 %v902
      %v1039 = vpop.f32.mrf.mxu0
      %v1040 = vadd.f32 %v925, %v1039
      %v1041 = vpop.f32.mrf.mxu0
      %v1042 = vadd.f32 %v925, %v1041
      %1043 = vmatmul.bf16.gmra.mxu0 %v903
      %v1044 = vpop.f32.mrf.mxu0
      %v1045 = vadd.f32 %v925, %v1044
      %v1046 = vpop.f32.mrf.mxu0
      %v1047 = vadd.f32 %v925, %v1046
      %1048 = vmatmul.bf16.gmra.mxu0 %v904
      %v1049 = vpop.f32.mrf.mxu0
      %v1050 = vadd.f32 %v925, %v1049
      %v1051 = vpop.f32.mrf.mxu0
      %v1052 = vadd.f32 %v925, %v1051
      %1053 = vmatmul.bf16.gmra.mxu0 %v905
      %v1054 = vpop.f32.mrf.mxu0
      %v1055 = vadd.f32 %v925, %v1054
      %v1056 = vpop.f32.mrf.mxu0
      %v1057 = vadd.f32 %v925, %v1056
      %1058 = vmatmul.bf16.gmra.mxu0 %v906
      %v1059 = vpop.f32.mrf.mxu0
      %v1060 = vadd.f32 %v925, %v1059
      %v1061 = vpop.f32.mrf.mxu0
      %v1062 = vadd.f32 %v925, %v1061
      %1063 = vdwg.mxu0
      %vm1064 = vcmp.gt.f32.partialorder %v985, 0.0
      %vm1065 = vcmp.gt.f32.partialorder %v987, 0.0
      %vm1066 = vcmp.gt.f32.partialorder %v990, 0.0
      %vm1067 = vcmp.gt.f32.partialorder %v992, 0.0
      %vm1068 = vcmp.gt.f32.partialorder %v995, 0.0
      %vm1069 = vcmp.gt.f32.partialorder %v997, 0.0
      %vm1070 = vcmp.gt.f32.partialorder %v1000, 0.0
      %vm1071 = vcmp.gt.f32.partialorder %v1002, 0.0
      %vm1072 = vcmp.gt.f32.partialorder %v1005, 0.0
      %vm1073 = vcmp.gt.f32.partialorder %v1007, 0.0
      %vm1074 = vcmp.gt.f32.partialorder %v1010, 0.0
      %vm1075 = vcmp.gt.f32.partialorder %v1012, 0.0
      %vm1076 = vcmp.gt.f32.partialorder %v1015, 0.0
      %vm1077 = vcmp.gt.f32.partialorder %v1017, 0.0
      %vm1078 = vcmp.gt.f32.partialorder %v1020, 0.0
      %vm1079 = vcmp.gt.f32.partialorder %v1022, 0.0
      %vm1080 = vcmp.gt.f32.partialorder %v1025, 0.0
      %vm1081 = vcmp.gt.f32.partialorder %v1027, 0.0
      %vm1082 = vcmp.gt.f32.partialorder %v1030, 0.0
      %vm1083 = vcmp.gt.f32.partialorder %v1032, 0.0
      %vm1084 = vcmp.gt.f32.partialorder %v1035, 0.0
      %vm1085 = vcmp.gt.f32.partialorder %v1037, 0.0
      %vm1086 = vcmp.gt.f32.partialorder %v1040, 0.0
      %vm1087 = vcmp.gt.f32.partialorder %v1042, 0.0
      %vm1088 = vcmp.gt.f32.partialorder %v1045, 0.0
      %vm1089 = vcmp.gt.f32.partialorder %v1047, 0.0
      %vm1090 = vcmp.gt.f32.partialorder %v1050, 0.0
      %vm1091 = vcmp.gt.f32.partialorder %v1052, 0.0
      %vm1092 = vcmp.gt.f32.partialorder %v1055, 0.0
      %vm1093 = vcmp.gt.f32.partialorder %v1057, 0.0
      %vm1094 = vcmp.gt.f32.partialorder %v1060, 0.0
      %vm1095 = vcmp.gt.f32.partialorder %v1062, 0.0
      %v1096 = vmul.f32 %v985, 0.1
      %v1097 = vmul.f32 %v987, 0.1
      %v1098 = vmul.f32 %v990, 0.1
      %v1099 = vmul.f32 %v992, 0.1
      %v1100 = vmul.f32 %v995, 0.1
      %v1101 = vmul.f32 %v997, 0.1
      %v1102 = vmul.f32 %v1000, 0.1
      %v1103 = vmul.f32 %v1002, 0.1
      %v1104 = vmul.f32 %v1005, 0.1
      %v1105 = vmul.f32 %v1007, 0.1
      %v1106 = vmul.f32 %v1010, 0.1
      %v1107 = vmul.f32 %v1012, 0.1
      %v1108 = vmul.f32 %v1015, 0.1
      %v1109 = vmul.f32 %v1017, 0.1
      %v1110 = vmul.f32 %v1020, 0.1
      %v1111 = vmul.f32 %v1022, 0.1
      %v1112 = vmul.f32 %v1025, 0.1
      %v1113 = vmul.f32 %v1027, 0.1
      %v1114 = vmul.f32 %v1030, 0.1
      %v1115 = vmul.f32 %v1032, 0.1
      %v1116 = vmul.f32 %v1035, 0.1
      %v1117 = vmul.f32 %v1037, 0.1
      %v1118 = vmul.f32 %v1040, 0.1
      %v1119 = vmul.f32 %v1042, 0.1
      %v1120 = vmul.f32 %v1045, 0.1
      %v1121 = vmul.f32 %v1047, 0.1
      %v1122 = vmul.f32 %v1050, 0.1
      %v1123 = vmul.f32 %v1052, 0.1
      %v1124 = vmul.f32 %v1055, 0.1
      %v1125 = vmul.f32 %v1057, 0.1
      %v1126 = vmul.f32 %v1060, 0.1
      %v1127 = vmul.f32 %v1062, 0.1
      %v1128 = vsel %vm1064, %v985, %v1096
      %v1129 = vsel %vm1065, %v987, %v1097
      %v1130 = vsel %vm1066, %v990, %v1098
      %v1131 = vsel %vm1067, %v992, %v1099
      %v1132 = vsel %vm1068, %v995, %v1100
      %v1133 = vsel %vm1069, %v997, %v1101
      %v1134 = vsel %vm1070, %v1000, %v1102
      %v1135 = vsel %vm1071, %v1002, %v1103
      %v1136 = vsel %vm1072, %v1005, %v1104
      %v1137 = vsel %vm1073, %v1007, %v1105
      %v1138 = vsel %vm1074, %v1010, %v1106
      %v1139 = vsel %vm1075, %v1012, %v1107
      %v1140 = vsel %vm1076, %v1015, %v1108
      %v1141 = vsel %vm1077, %v1017, %v1109
      %v1142 = vsel %vm1078, %v1020, %v1110
      %v1143 = vsel %vm1079, %v1022, %v1111
      %v1144 = vsel %vm1080, %v1025, %v1112
      %v1145 = vsel %vm1081, %v1027, %v1113
      %v1146 = vsel %vm1082, %v1030, %v1114
      %v1147 = vsel %vm1083, %v1032, %v1115
      %v1148 = vsel %vm1084, %v1035, %v1116
      %v1149 = vsel %vm1085, %v1037, %v1117
      %v1150 = vsel %vm1086, %v1040, %v1118
      %v1151 = vsel %vm1087, %v1042, %v1119
      %v1152 = vsel %vm1088, %v1045, %v1120
      %v1153 = vsel %vm1089, %v1047, %v1121
      %v1154 = vsel %vm1090, %v1050, %v1122
      %v1155 = vsel %vm1091, %v1052, %v1123
      %v1156 = vsel %vm1092, %v1055, %v1124
      %v1157 = vsel %vm1093, %v1057, %v1125
      %v1158 = vsel %vm1094, %v1060, %v1126
      %v1159 = vsel %vm1095, %v1062, %v1127
      %v1160 = vpack.c.bf16 %v1129, %v1128
      %v1161 = vpack.c.bf16 %v1131, %v1130
      %v1162 = vpack.c.bf16 %v1133, %v1132
      %v1163 = vpack.c.bf16 %v1135, %v1134
      %v1164 = vpack.c.bf16 %v1137, %v1136
      %v1165 = vpack.c.bf16 %v1139, %v1138
      %v1166 = vpack.c.bf16 %v1141, %v1140
      %v1167 = vpack.c.bf16 %v1143, %v1142
      %v1168 = vpack.c.bf16 %v1145, %v1144
      %v1169 = vpack.c.bf16 %v1147, %v1146
      %v1170 = vpack.c.bf16 %v1149, %v1148
      %v1171 = vpack.c.bf16 %v1151, %v1150
      %v1172 = vpack.c.bf16 %v1153, %v1152
      %v1173 = vpack.c.bf16 %v1155, %v1154
      %v1174 = vpack.c.bf16 %v1157, %v1156
      %v1175 = vpack.c.bf16 %v1159, %v1158
      %v1176 = vld [vmem:[%s5] sm:$0xf]
      %v1177 = vld [vmem:[%s5 + $0x4] sm:$0xf]
      %v1178 = vld [vmem:[%s5 + $0x8] sm:$0xf]
      %v1179 = vld [vmem:[%s5 + $0xc] sm:$0xf]
      %v1180 = vld [vmem:[%s5 + $0x10] sm:$0xf]
      %v1181 = vld [vmem:[%s5 + $0x14] sm:$0xf]
      %v1182 = vld [vmem:[%s5 + $0x18] sm:$0xf]
      %v1183 = vld [vmem:[%s5 + $0x1c] sm:$0xf]
      %v1184 = vld [vmem:[%s5 + $0x20] sm:$0xf]
      %v1185 = vld [vmem:[%s5 + $0x24] sm:$0xf]
      %v1186 = vld [vmem:[%s5 + $0x28] sm:$0xf]
      %v1187 = vld [vmem:[%s5 + $0x2c] sm:$0xf]
      %v1188 = vld [vmem:[%s5 + $0x30] sm:$0xf]
      %v1189 = vld [vmem:[%s5 + $0x34] sm:$0xf]
      %v1190 = vld [vmem:[%s5 + $0x38] sm:$0xf]
      %v1191 = vld [vmem:[%s5 + $0x3c] sm:$0xf]
      %v1192 = vld [vmem:[%s1 + $0x3] sm:$0x1]
      %v1194 = vperm.slane %v1192, 0
      %v1212 = vunpack.c.l.b16 %v1176
      %v1213 = vunpack.c.l.b16 %v1177
      %v1214 = vunpack.c.l.b16 %v1178
      %v1215 = vunpack.c.l.b16 %v1179
      %v1216 = vunpack.c.l.b16 %v1180
      %v1217 = vunpack.c.l.b16 %v1181
      %v1218 = vunpack.c.l.b16 %v1182
      %v1219 = vunpack.c.l.b16 %v1183
      %v1220 = vunpack.c.l.b16 %v1184
      %v1221 = vunpack.c.l.b16 %v1185
      %v1222 = vunpack.c.l.b16 %v1186
      %v1223 = vunpack.c.l.b16 %v1187
      %v1224 = vunpack.c.l.b16 %v1188
      %v1225 = vunpack.c.l.b16 %v1189
      %v1226 = vunpack.c.l.b16 %v1190
      %v1227 = vunpack.c.l.b16 %v1191
      %v1228 = vpack.c.b16 %v1213, %v1212
      %v1229 = vpack.c.b16 %v1215, %v1214
      %v1230 = vpack.c.b16 %v1217, %v1216
      %v1231 = vpack.c.b16 %v1219, %v1218
      %v1232 = vpack.c.b16 %v1221, %v1220
      %v1233 = vpack.c.b16 %v1223, %v1222
      %v1234 = vpack.c.b16 %v1225, %v1224
      %v1235 = vpack.c.b16 %v1227, %v1226
      %1244 = vmatpush.bf16.msra.mxu0 %v1235
      %1245 = vmatpush.bf16.msra.mxu0 %v1234
      %1246 = vmatpush.bf16.msra.mxu0 %v1233
      %1247 = vmatpush.bf16.msra.mxu0 %v1232
      %1248 = vmatpush.bf16.msra.mxu0 %v1231
      %1249 = vmatpush.bf16.msra.mxu0 %v1230
      %1250 = vmatpush.bf16.msra.mxu0 %v1229
      %1251 = vmatpush.bf16.msra.mxu0 %v1228
      %1252 = vmatmul.bf16.gmra.mxu0 %v1160
      %v1253 = vpop.f32.mrf.mxu0
      %v1254 = vadd.f32 %v1194, %v1253
      %v1255 = vpop.f32.mrf.mxu0
      %v1256 = vadd.f32 %v1194, %v1255
      %1257 = vmatmul.bf16.gmra.mxu0 %v1161
      %v1258 = vpop.f32.mrf.mxu0
      %v1259 = vadd.f32 %v1194, %v1258
      %v1260 = vpop.f32.mrf.mxu0
      %v1261 = vadd.f32 %v1194, %v1260
      %1262 = vmatmul.bf16.gmra.mxu0 %v1162
      %v1263 = vpop.f32.mrf.mxu0
      %v1264 = vadd.f32 %v1194, %v1263
      %v1265 = vpop.f32.mrf.mxu0
      %v1266 = vadd.f32 %v1194, %v1265
      %1267 = vmatmul.bf16.gmra.mxu0 %v1163
      %v1268 = vpop.f32.mrf.mxu0
      %v1269 = vadd.f32 %v1194, %v1268
      %v1270 = vpop.f32.mrf.mxu0
      %v1271 = vadd.f32 %v1194, %v1270
      %1272 = vmatmul.bf16.gmra.mxu0 %v1164
      %v1273 = vpop.f32.mrf.mxu0
      %v1274 = vadd.f32 %v1194, %v1273
      %v1275 = vpop.f32.mrf.mxu0
      %v1276 = vadd.f32 %v1194, %v1275
      %1277 = vmatmul.bf16.gmra.mxu0 %v1165
      %v1278 = vpop.f32.mrf.mxu0
      %v1279 = vadd.f32 %v1194, %v1278
      %v1280 = vpop.f32.mrf.mxu0
      %v1281 = vadd.f32 %v1194, %v1280
      %1282 = vmatmul.bf16.gmra.mxu0 %v1166
      %v1283 = vpop.f32.mrf.mxu0
      %v1284 = vadd.f32 %v1194, %v1283
      %v1285 = vpop.f32.mrf.mxu0
      %v1286 = vadd.f32 %v1194, %v1285
      %1287 = vmatmul.bf16.gmra.mxu0 %v1167
      %v1288 = vpop.f32.mrf.mxu0
      %v1289 = vadd.f32 %v1194, %v1288
      %v1290 = vpop.f32.mrf.mxu0
      %v1291 = vadd.f32 %v1194, %v1290
      %1292 = vmatmul.bf16.gmra.mxu0 %v1168
      %v1293 = vpop.f32.mrf.mxu0
      %v1294 = vadd.f32 %v1194, %v1293
      %v1295 = vpop.f32.mrf.mxu0
      %v1296 = vadd.f32 %v1194, %v1295
      %1297 = vmatmul.bf16.gmra.mxu0 %v1169
      %v1298 = vpop.f32.mrf.mxu0
      %v1299 = vadd.f32 %v1194, %v1298
      %v1300 = vpop.f32.mrf.mxu0
      %v1301 = vadd.f32 %v1194, %v1300
      %1302 = vmatmul.bf16.gmra.mxu0 %v1170
      %v1303 = vpop.f32.mrf.mxu0
      %v1304 = vadd.f32 %v1194, %v1303
      %v1305 = vpop.f32.mrf.mxu0
      %v1306 = vadd.f32 %v1194, %v1305
      %1307 = vmatmul.bf16.gmra.mxu0 %v1171
      %v1308 = vpop.f32.mrf.mxu0
      %v1309 = vadd.f32 %v1194, %v1308
      %v1310 = vpop.f32.mrf.mxu0
      %v1311 = vadd.f32 %v1194, %v1310
      %1312 = vmatmul.bf16.gmra.mxu0 %v1172
      %v1313 = vpop.f32.mrf.mxu0
      %v1314 = vadd.f32 %v1194, %v1313
      %v1315 = vpop.f32.mrf.mxu0
      %v1316 = vadd.f32 %v1194, %v1315
      %1317 = vmatmul.bf16.gmra.mxu0 %v1173
      %v1318 = vpop.f32.mrf.mxu0
      %v1319 = vadd.f32 %v1194, %v1318
      %v1320 = vpop.f32.mrf.mxu0
      %v1321 = vadd.f32 %v1194, %v1320
      %1322 = vmatmul.bf16.gmra.mxu0 %v1174
      %v1323 = vpop.f32.mrf.mxu0
      %v1324 = vadd.f32 %v1194, %v1323
      %v1325 = vpop.f32.mrf.mxu0
      %v1326 = vadd.f32 %v1194, %v1325
      %1327 = vmatmul.bf16.gmra.mxu0 %v1175
      %v1328 = vpop.f32.mrf.mxu0
      %v1329 = vadd.f32 %v1194, %v1328
      %v1330 = vpop.f32.mrf.mxu0
      %v1331 = vadd.f32 %v1194, %v1330
      %1332 = vdwg.mxu0
      %1333 = vmax.xlane.f32.xlu0 %v1254
      %v1334 = vpop.xlane.xlu0 %1333
      %1335 = vmax.xlane.f32.xlu0 %v1256
      %v1336 = vpop.xlane.xlu0 %1335
      %1337 = vmax.xlane.f32.xlu0 %v1259
      %v1338 = vpop.xlane.xlu0 %1337
      %1339 = vmax.xlane.f32.xlu0 %v1261
      %v1340 = vpop.xlane.xlu0 %1339
      %1341 = vmax.xlane.f32.xlu0 %v1264
      %v1342 = vpop.xlane.xlu0 %1341
      %1343 = vmax.xlane.f32.xlu0 %v1266
      %v1344 = vpop.xlane.xlu0 %1343
      %1345 = vmax.xlane.f32.xlu0 %v1269
      %v1346 = vpop.xlane.xlu0 %1345
      %1347 = vmax.xlane.f32.xlu0 %v1271
      %v1348 = vpop.xlane.xlu0 %1347
      %1349 = vmax.xlane.f32.xlu0 %v1274
      %v1350 = vpop.xlane.xlu0 %1349
      %1351 = vmax.xlane.f32.xlu0 %v1276
      %v1352 = vpop.xlane.xlu0 %1351
      %1353 = vmax.xlane.f32.xlu0 %v1279
      %v1354 = vpop.xlane.xlu0 %1353
      %1355 = vmax.xlane.f32.xlu0 %v1281
      %v1356 = vpop.xlane.xlu0 %1355
      %1357 = vmax.xlane.f32.xlu0 %v1284
      %v1358 = vpop.xlane.xlu0 %1357
      %1359 = vmax.xlane.f32.xlu0 %v1286
      %v1360 = vpop.xlane.xlu0 %1359
      %1361 = vmax.xlane.f32.xlu0 %v1289
      %v1362 = vpop.xlane.xlu0 %1361
      %1363 = vmax.xlane.f32.xlu0 %v1291
      %v1364 = vpop.xlane.xlu0 %1363
      %1365 = vmax.xlane.f32.xlu0 %v1294
      %v1366 = vpop.xlane.xlu0 %1365
      %1367 = vmax.xlane.f32.xlu0 %v1296
      %v1368 = vpop.xlane.xlu0 %1367
      %1369 = vmax.xlane.f32.xlu0 %v1299
      %v1370 = vpop.xlane.xlu0 %1369
      %1371 = vmax.xlane.f32.xlu0 %v1301
      %v1372 = vpop.xlane.xlu0 %1371
      %1373 = vmax.xlane.f32.xlu0 %v1304
      %v1374 = vpop.xlane.xlu0 %1373
      %1375 = vmax.xlane.f32.xlu0 %v1306
      %v1376 = vpop.xlane.xlu0 %1375
      %1377 = vmax.xlane.f32.xlu0 %v1309
      %v1378 = vpop.xlane.xlu0 %1377
      %1379 = vmax.xlane.f32.xlu0 %v1311
      %v1380 = vpop.xlane.xlu0 %1379
      %1381 = vmax.xlane.f32.xlu0 %v1314
      %v1382 = vpop.xlane.xlu0 %1381
      %1383 = vmax.xlane.f32.xlu0 %v1316
      %v1384 = vpop.xlane.xlu0 %1383
      %1385 = vmax.xlane.f32.xlu0 %v1319
      %v1386 = vpop.xlane.xlu0 %1385
      %1387 = vmax.xlane.f32.xlu0 %v1321
      %v1388 = vpop.xlane.xlu0 %1387
      %1389 = vmax.xlane.f32.xlu0 %v1324
      %v1390 = vpop.xlane.xlu0 %1389
      %1391 = vmax.xlane.f32.xlu0 %v1326
      %v1392 = vpop.xlane.xlu0 %1391
      %1393 = vmax.xlane.f32.xlu0 %v1329
      %v1394 = vpop.xlane.xlu0 %1393
      %1395 = vmax.xlane.f32.xlu0 %v1331
      %v1396 = vpop.xlane.xlu0 %1395
      %v1397 = vsub.f32 %v1254, %v1334
      %v1398 = vsub.f32 %v1256, %v1336
      %v1399 = vsub.f32 %v1259, %v1338
      %v1400 = vsub.f32 %v1261, %v1340
      %v1401 = vsub.f32 %v1264, %v1342
      %v1402 = vsub.f32 %v1266, %v1344
      %v1403 = vsub.f32 %v1269, %v1346
      %v1404 = vsub.f32 %v1271, %v1348
      %v1405 = vsub.f32 %v1274, %v1350
      %v1406 = vsub.f32 %v1276, %v1352
      %v1407 = vsub.f32 %v1279, %v1354
      %v1408 = vsub.f32 %v1281, %v1356
      %v1409 = vsub.f32 %v1284, %v1358
      %v1410 = vsub.f32 %v1286, %v1360
      %v1411 = vsub.f32 %v1289, %v1362
      %v1412 = vsub.f32 %v1291, %v1364
      %v1413 = vsub.f32 %v1294, %v1366
      %v1414 = vsub.f32 %v1296, %v1368
      %v1415 = vsub.f32 %v1299, %v1370
      %v1416 = vsub.f32 %v1301, %v1372
      %v1417 = vsub.f32 %v1304, %v1374
      %v1418 = vsub.f32 %v1306, %v1376
      %v1419 = vsub.f32 %v1309, %v1378
      %v1420 = vsub.f32 %v1311, %v1380
      %v1421 = vsub.f32 %v1314, %v1382
      %v1422 = vsub.f32 %v1316, %v1384
      %v1423 = vsub.f32 %v1319, %v1386
      %v1424 = vsub.f32 %v1321, %v1388
      %v1425 = vsub.f32 %v1324, %v1390
      %v1426 = vsub.f32 %v1326, %v1392
      %v1427 = vsub.f32 %v1329, %v1394
      %v1428 = vsub.f32 %v1331, %v1396
      %v1429 = vmul.f32 %v1397, 1.442695
      %v1430 = vpow.pop %v1429
      %v1431 = vmul.f32 %v1398, 1.442695
      %v1432 = vpow.pop %v1431
      %v1433 = vmul.f32 %v1399, 1.442695
      %v1434 = vpow.pop %v1433
      %v1435 = vmul.f32 %v1400, 1.442695
      %v1436 = vpow.pop %v1435
      %v1437 = vmul.f32 %v1401, 1.442695
      %v1438 = vpow.pop %v1437
      %v1439 = vmul.f32 %v1402, 1.442695
      %v1440 = vpow.pop %v1439
      %v1441 = vmul.f32 %v1403, 1.442695
      %v1442 = vpow.pop %v1441
      %v1443 = vmul.f32 %v1404, 1.442695
      %v1444 = vpow.pop %v1443
      %v1445 = vmul.f32 %v1405, 1.442695
      %v1446 = vpow.pop %v1445
      %v1447 = vmul.f32 %v1406, 1.442695
      %v1448 = vpow.pop %v1447
      %v1449 = vmul.f32 %v1407, 1.442695
      %v1450 = vpow.pop %v1449
      %v1451 = vmul.f32 %v1408, 1.442695
      %v1452 = vpow.pop %v1451
      %v1453 = vmul.f32 %v1409, 1.442695
      %v1454 = vpow.pop %v1453
      %v1455 = vmul.f32 %v1410, 1.442695
      %v1456 = vpow.pop %v1455
      %v1457 = vmul.f32 %v1411, 1.442695
      %v1458 = vpow.pop %v1457
      %v1459 = vmul.f32 %v1412, 1.442695
      %v1460 = vpow.pop %v1459
      %v1461 = vmul.f32 %v1413, 1.442695
      %v1462 = vpow.pop %v1461
      %v1463 = vmul.f32 %v1414, 1.442695
      %v1464 = vpow.pop %v1463
      %v1465 = vmul.f32 %v1415, 1.442695
      %v1466 = vpow.pop %v1465
      %v1467 = vmul.f32 %v1416, 1.442695
      %v1468 = vpow.pop %v1467
      %v1469 = vmul.f32 %v1417, 1.442695
      %v1470 = vpow.pop %v1469
      %v1471 = vmul.f32 %v1418, 1.442695
      %v1472 = vpow.pop %v1471
      %v1473 = vmul.f32 %v1419, 1.442695
      %v1474 = vpow.pop %v1473
      %v1475 = vmul.f32 %v1420, 1.442695
      %v1476 = vpow.pop %v1475
      %v1477 = vmul.f32 %v1421, 1.442695
      %v1478 = vpow.pop %v1477
      %v1479 = vmul.f32 %v1422, 1.442695
      %v1480 = vpow.pop %v1479
      %v1481 = vmul.f32 %v1423, 1.442695
      %v1482 = vpow.pop %v1481
      %v1483 = vmul.f32 %v1424, 1.442695
      %v1484 = vpow.pop %v1483
      %v1485 = vmul.f32 %v1425, 1.442695
      %v1486 = vpow.pop %v1485
      %v1487 = vmul.f32 %v1426, 1.442695
      %v1488 = vpow.pop %v1487
      %v1489 = vmul.f32 %v1427, 1.442695
      %v1490 = vpow.pop %v1489
      %v1491 = vmul.f32 %v1428, 1.442695
      %v1492 = vpow.pop %v1491
      %1493 = vadd.xlane.f32.xlu0 %v1430
      %v1494 = vpop.xlane.xlu0 %1493
      %1495 = vadd.xlane.f32.xlu0 %v1432
      %v1496 = vpop.xlane.xlu0 %1495
      %1497 = vadd.xlane.f32.xlu0 %v1434
      %v1498 = vpop.xlane.xlu0 %1497
      %1499 = vadd.xlane.f32.xlu0 %v1436
      %v1500 = vpop.xlane.xlu0 %1499
      %1501 = vadd.xlane.f32.xlu0 %v1438
      %v1502 = vpop.xlane.xlu0 %1501
      %1503 = vadd.xlane.f32.xlu0 %v1440
      %v1504 = vpop.xlane.xlu0 %1503
      %1505 = vadd.xlane.f32.xlu0 %v1442
      %v1506 = vpop.xlane.xlu0 %1505
      %1507 = vadd.xlane.f32.xlu0 %v1444
      %v1508 = vpop.xlane.xlu0 %1507
      %1509 = vadd.xlane.f32.xlu0 %v1446
      %v1510 = vpop.xlane.xlu0 %1509
      %1511 = vadd.xlane.f32.xlu0 %v1448
      %v1512 = vpop.xlane.xlu0 %1511
      %1513 = vadd.xlane.f32.xlu0 %v1450
      %v1514 = vpop.xlane.xlu0 %1513
      %1515 = vadd.xlane.f32.xlu0 %v1452
      %v1516 = vpop.xlane.xlu0 %1515
      %1517 = vadd.xlane.f32.xlu0 %v1454
      %v1518 = vpop.xlane.xlu0 %1517
      %1519 = vadd.xlane.f32.xlu0 %v1456
      %v1520 = vpop.xlane.xlu0 %1519
      %1521 = vadd.xlane.f32.xlu0 %v1458
      %v1522 = vpop.xlane.xlu0 %1521
      %1523 = vadd.xlane.f32.xlu0 %v1460
      %v1524 = vpop.xlane.xlu0 %1523
      %1525 = vadd.xlane.f32.xlu0 %v1462
      %v1526 = vpop.xlane.xlu0 %1525
      %1527 = vadd.xlane.f32.xlu0 %v1464
      %v1528 = vpop.xlane.xlu0 %1527
      %1529 = vadd.xlane.f32.xlu0 %v1466
      %v1530 = vpop.xlane.xlu0 %1529
      %1531 = vadd.xlane.f32.xlu0 %v1468
      %v1532 = vpop.xlane.xlu0 %1531
      %1533 = vadd.xlane.f32.xlu0 %v1470
      %v1534 = vpop.xlane.xlu0 %1533
      %1535 = vadd.xlane.f32.xlu0 %v1472
      %v1536 = vpop.xlane.xlu0 %1535
      %1537 = vadd.xlane.f32.xlu0 %v1474
      %v1538 = vpop.xlane.xlu0 %1537
      %1539 = vadd.xlane.f32.xlu0 %v1476
      %v1540 = vpop.xlane.xlu0 %1539
      %1541 = vadd.xlane.f32.xlu0 %v1478
      %v1542 = vpop.xlane.xlu0 %1541
      %1543 = vadd.xlane.f32.xlu0 %v1480
      %v1544 = vpop.xlane.xlu0 %1543
      %1545 = vadd.xlane.f32.xlu0 %v1482
      %v1546 = vpop.xlane.xlu0 %1545
      %1547 = vadd.xlane.f32.xlu0 %v1484
      %v1548 = vpop.xlane.xlu0 %1547
      %1549 = vadd.xlane.f32.xlu0 %v1486
      %v1550 = vpop.xlane.xlu0 %1549
      %1551 = vadd.xlane.f32.xlu0 %v1488
      %v1552 = vpop.xlane.xlu0 %1551
      %1553 = vadd.xlane.f32.xlu0 %v1490
      %v1554 = vpop.xlane.xlu0 %1553
      %1555 = vadd.xlane.f32.xlu0 %v1492
      %v1556 = vpop.xlane.xlu0 %1555
      %v1557 = vrcp.pop %v1494
      %v1558 = vrcp.pop %v1496
      %v1559 = vrcp.pop %v1498
      %v1560 = vrcp.pop %v1500
      %v1561 = vrcp.pop %v1502
      %v1562 = vrcp.pop %v1504
      %v1563 = vrcp.pop %v1506
      %v1564 = vrcp.pop %v1508
      %v1565 = vrcp.pop %v1510
      %v1566 = vrcp.pop %v1512
      %v1567 = vrcp.pop %v1514
      %v1568 = vrcp.pop %v1516
      %v1569 = vrcp.pop %v1518
      %v1570 = vrcp.pop %v1520
      %v1571 = vrcp.pop %v1522
      %v1572 = vrcp.pop %v1524
      %v1573 = vrcp.pop %v1526
      %v1574 = vrcp.pop %v1528
      %v1575 = vrcp.pop %v1530
      %v1576 = vrcp.pop %v1532
      %v1577 = vrcp.pop %v1534
      %v1578 = vrcp.pop %v1536
      %v1579 = vrcp.pop %v1538
      %v1580 = vrcp.pop %v1540
      %v1581 = vrcp.pop %v1542
      %v1582 = vrcp.pop %v1544
      %v1583 = vrcp.pop %v1546
      %v1584 = vrcp.pop %v1548
      %v1585 = vrcp.pop %v1550
      %v1586 = vrcp.pop %v1552
      %v1587 = vrcp.pop %v1554
      %v1588 = vrcp.pop %v1556
      %v1589 = vmul.f32 %v1430, %v1557
      %v1590 = vmul.f32 %v1432, %v1558
      %v1591 = vmul.f32 %v1434, %v1559
      %v1592 = vmul.f32 %v1436, %v1560
      %v1593 = vmul.f32 %v1438, %v1561
      %v1594 = vmul.f32 %v1440, %v1562
      %v1595 = vmul.f32 %v1442, %v1563
      %v1596 = vmul.f32 %v1444, %v1564
      %v1597 = vmul.f32 %v1446, %v1565
      %v1598 = vmul.f32 %v1448, %v1566
      %v1599 = vmul.f32 %v1450, %v1567
      %v1600 = vmul.f32 %v1452, %v1568
      %v1601 = vmul.f32 %v1454, %v1569
      %v1602 = vmul.f32 %v1456, %v1570
      %v1603 = vmul.f32 %v1458, %v1571
      %v1604 = vmul.f32 %v1460, %v1572
      %v1605 = vmul.f32 %v1462, %v1573
      %v1606 = vmul.f32 %v1464, %v1574
      %v1607 = vmul.f32 %v1466, %v1575
      %v1608 = vmul.f32 %v1468, %v1576
      %v1609 = vmul.f32 %v1470, %v1577
      %v1610 = vmul.f32 %v1472, %v1578
      %v1611 = vmul.f32 %v1474, %v1579
      %v1612 = vmul.f32 %v1476, %v1580
      %v1613 = vmul.f32 %v1478, %v1581
      %v1614 = vmul.f32 %v1480, %v1582
      %v1615 = vmul.f32 %v1482, %v1583
      %v1616 = vmul.f32 %v1484, %v1584
      %v1617 = vmul.f32 %v1486, %v1585
      %v1618 = vmul.f32 %v1488, %v1586
      %v1619 = vmul.f32 %v1490, %v1587
      %v1620 = vmul.f32 %v1492, %v1588
      %vm1621 = vcmask 31744
      %1622 = vst.msk [vmem:[%s253] sm:$0xff] %vm1621, %v1589
      %1623 = vst.msk [vmem:[%s253 + $0x8] sm:$0xff] %vm1621, %v1590
      %1624 = vst.msk [vmem:[%s253 + $0x10] sm:$0xff] %vm1621, %v1591
      %1625 = vst.msk [vmem:[%s253 + $0x18] sm:$0xff] %vm1621, %v1592
      %1626 = vst.msk [vmem:[%s253 + $0x20] sm:$0xff] %vm1621, %v1593
      %1627 = vst.msk [vmem:[%s253 + $0x28] sm:$0xff] %vm1621, %v1594
      %1628 = vst.msk [vmem:[%s253 + $0x30] sm:$0xff] %vm1621, %v1595
      %1629 = vst.msk [vmem:[%s253 + $0x38] sm:$0xff] %vm1621, %v1596
      %1630 = vst.msk [vmem:[%s253 + $0x40] sm:$0xff] %vm1621, %v1597
      %1631 = vst.msk [vmem:[%s253 + $0x48] sm:$0xff] %vm1621, %v1598
      %1632 = vst.msk [vmem:[%s253 + $0x50] sm:$0xff] %vm1621, %v1599
      %1633 = vst.msk [vmem:[%s253 + $0x58] sm:$0xff] %vm1621, %v1600
      %1634 = vst.msk [vmem:[%s253 + $0x60] sm:$0xff] %vm1621, %v1601
      %1635 = vst.msk [vmem:[%s253 + $0x68] sm:$0xff] %vm1621, %v1602
      %1636 = vst.msk [vmem:[%s253 + $0x70] sm:$0xff] %vm1621, %v1603
      %1637 = vst.msk [vmem:[%s253 + $0x78] sm:$0xff] %vm1621, %v1604
      %1638 = vst.msk [vmem:[%s253 + $0x80] sm:$0xff] %vm1621, %v1605
      %1639 = vst.msk [vmem:[%s253 + $0x88] sm:$0xff] %vm1621, %v1606
      %1640 = vst.msk [vmem:[%s253 + $0x90] sm:$0xff] %vm1621, %v1607
      %1641 = vst.msk [vmem:[%s253 + $0x98] sm:$0xff] %vm1621, %v1608
      %1642 = vst.msk [vmem:[%s253 + $0xa0] sm:$0xff] %vm1621, %v1609
      %1643 = vst.msk [vmem:[%s253 + $0xa8] sm:$0xff] %vm1621, %v1610
      %1644 = vst.msk [vmem:[%s253 + $0xb0] sm:$0xff] %vm1621, %v1611
      %1645 = vst.msk [vmem:[%s253 + $0xb8] sm:$0xff] %vm1621, %v1612
      %1646 = vst.msk [vmem:[%s253 + $0xc0] sm:$0xff] %vm1621, %v1613
      %1647 = vst.msk [vmem:[%s253 + $0xc8] sm:$0xff] %vm1621, %v1614
      %1648 = vst.msk [vmem:[%s253 + $0xd0] sm:$0xff] %vm1621, %v1615
      %1649 = vst.msk [vmem:[%s253 + $0xd8] sm:$0xff] %vm1621, %v1616
      %1650 = vst.msk [vmem:[%s253 + $0xe0] sm:$0xff] %vm1621, %v1617
      %1651 = vst.msk [vmem:[%s253 + $0xe8] sm:$0xff] %vm1621, %v1618
      %1652 = vst.msk [vmem:[%s253 + $0xf0] sm:$0xff] %vm1621, %v1619
      %1653 = vst.msk [vmem:[%s253 + $0xf8] sm:$0xff] %vm1621, %v1620
      %s1654 = smul.u32 32, %s17
      %p1655 = scmp.lt.s32.totalorder %s1654, 63
      %s1656 = scalar_select %p1655, %s1654, 63
      %s1657 = smul.addr %s1656, 8
      %s1658 = scalar_lea.vmem %s6, %s1657
      // Predicated region
      $region45: #{forward.1} parent=43 // pred_check
        %p1659 = pneg %p166
      $region46: #{forward.1} parent=43 // pred_check_branch
        %1661 = sbr.rel (%p1659) target = $region48
      $region47: #{forward.1} parent=43 // pred_region
        %s1662 = smul.u32 32, %s17
      $region48: #{forward.1} parent=43 // pred_fallthru
        _
    $region44: #{forward.1} parent=5 // pred_fallthru
      _
    %p1663 = scmp.le.s32.totalorder 2, %s12
    // Predicated region
    $region49: #{forward.1} parent=5 // pred_check
      %p1664 = pneg %p1663
    $region50: #{forward.1} parent=5 // pred_check_branch
      %1666 = sbr.rel (%p1664) target = $region52
    $region51: #{forward.1} parent=5 // pred_region
      %s1667 = ssub.s32 %s12, 2
      // Predicated region
      $region53: #{forward.1} parent=51 // pred_check
        %p1668 = pneg %p172
      $region54: #{forward.1} parent=51 // pred_check_branch
        %1670 = sbr.rel (%p1668) target = $region56
      $region55: #{forward.1} parent=51 // pred_region
        %s1671 = smul.u32 32, %s18
        %p1672 = scmp.lt.s32.totalorder %s1671, 63
        %s1673 = scalar_select %p1672, %s1671, 63
        %s1674 = smul.addr %s1673, 8
        %s1675 = scalar_lea.vmem %s6, %s1674
      $region56: #{forward.1} parent=51 // pred_fallthru
        _
    $region52: #{forward.1} parent=5 // pred_fallthru
      _
  $region6: #{forward.1} parent=0 // loop_footer
    %s16 = sadd.s32 1, %s12
  $region7: #{forward.1} parent=0 // loop_footer_branch
    %11 = sbr.rel target = $region3
  $region8: #{forward.1} parent=0 // loop_exit
    _

</llo_original>
